<compile_context>
chip_gen: v7x
topology: tpu7x:2x2x1
jax: 0.10.0
libtpu: 0.0.40
codegen_flags: <defaults>
</compile_context>

<pallas_src>
import functools
from math import sqrt

import jax
import jax.numpy as jnp
from jax.experimental import pallas as pl
from jax.experimental.pallas import tpu as pltpu


# ----------------------------------------------------------------------------
# helpers
# ----------------------------------------------------------------------------
def _const_spec(block_shape, index_map):
    """BlockSpec for grid-constant operands; single-buffered when supported."""
    if hasattr(pl, "Buffered"):
        try:
            return pl.BlockSpec(block_shape, index_map,
                                pipeline_mode=pl.Buffered(1))
        except TypeError:
            pass
    return pl.BlockSpec(block_shape, index_map)


def _vmem_limit_bytes():
    """Pick a scoped-VMEM budget appropriate for the TPU generation."""
    cap = None
    try:
        cap = pltpu.get_tpu_info().vmem_capacity_bytes
    except Exception:
        cap = None
    if cap is None:
        try:
            kind = jax.devices()[0].device_kind.lower()
        except Exception:
            kind = ""
        cap = (64 * 1024 * 1024 if ("v7" in kind or "7x" in kind)
               else 128 * 1024 * 1024)          # v5e / v6e physical VMEM
    # leave pipeline headroom: <= 3/4 of physical, capped at 96 MiB
    return min(96 * 1024 * 1024, int(cap) * 3 // 4)


def _pick_block(s, candidates=(256, 128, 64, 32, 16, 8)):
    for c in candidates:
        if s % c == 0:
            return c
    return s   # NOTE: for huge S not divisible by any candidate this degrades


# ----------------------------------------------------------------------------
# Kernel 1: fused RMSNorm + Q/K/V projection (once per token)
# ----------------------------------------------------------------------------
def _rmsnorm_qkv_kernel(x_ref, gamma_ref, wq_ref, wk_ref, wv_ref,
                        q_ref, k_ref, v_ref, xn_ref, *, n_heads, eps):
    x = x_ref[0].astype(jnp.float32)                      # (bs, D)
    gamma = gamma_ref[...].astype(jnp.float32)            # (1, D)
    ms = jnp.mean(x * x, axis=-1, keepdims=True)
    xn = x * jax.lax.rsqrt(ms + eps) * gamma              # (bs, D) f32
    xn_ref[0] = xn.astype(xn_ref.dtype)

    xb = xn.astype(jnp.bfloat16)
    for h in range(n_heads):                              # per-head (bs,D)x(D,d)
        q_ref[0, h] = jnp.dot(xb, wq_ref[h],
                              preferred_element_type=jnp.float32
                              ).astype(q_ref.dtype)
        k_ref[0, h] = jnp.dot(xb, wk_ref[h],
                              preferred_element_type=jnp.float32
                              ).astype(k_ref.dtype)
        v_ref[0, h] = jnp.dot(xb, wv_ref[h],
                              preferred_element_type=jnp.float32
                              ).astype(v_ref.dtype)


# ----------------------------------------------------------------------------
# Kernel 2: flash attention + output projection + residual
# ----------------------------------------------------------------------------
def _flash_attn_kernel(*refs, n_heads, block_q, block_kv, causal):
    if causal:
        (q_ref, k_ref, v_ref, xn_ref, wo_ref, o_ref,
         m_sc, l_sc, acc_sc) = refs
        mask_ref = None
    else:
        (q_ref, k_ref, v_ref, mask_ref, xn_ref, wo_ref, o_ref,
         m_sc, l_sc, acc_sc) = refs

    qi = pl.program_id(1)
    ki = pl.program_id(2)
    last_kv = pl.num_programs(2) - 1

    @pl.when(ki == 0)
    def _init():
        m_sc[...] = jnp.full(m_sc.shape, -jnp.inf, dtype=jnp.float32)
        l_sc[...] = jnp.zeros_like(l_sc)
        acc_sc[...] = jnp.zeros_like(acc_sc)

    def _online_softmax_step():
        q = q_ref[0]                                        # (H, tq, d) bf16
        k = k_ref[0]                                        # (H, tkv, d) bf16
        v = v_ref[0]                                        # (H, tkv, d) bf16
        s = jnp.einsum("hqd,hkd->hqk", q, k,
                       preferred_element_type=jnp.float32)  # (H, tq, tkv) f32
        if causal:
            row = (jax.lax.broadcasted_iota(jnp.int32, (block_q, block_kv), 0)
                   + qi * block_q)
            col = (jax.lax.broadcasted_iota(jnp.int32, (block_q, block_kv), 1)
                   + ki * block_kv)
            s = jnp.where((col <= row)[None, :, :], s, -1e9)
        else:
            # mask is (tq, tkv); broadcast over heads in-kernel (no H-fold DMA)
            s = s + mask_ref[0][None, :, :].astype(jnp.float32)

        m_prev = m_sc[...]                                   # (H, tq)
        m_new = jnp.maximum(m_prev, jnp.max(s, axis=-1))     # (H, tq)
        alpha = jnp.exp(m_prev - m_new)                      # (H, tq)
        p = jnp.exp(s - m_new[..., None])                    # (H, tq, tkv)
        l_sc[...] = alpha * l_sc[...] + jnp.sum(p, axis=-1)
        acc_sc[...] = alpha[..., None] * acc_sc[...] + jnp.einsum(
            "hqk,hkd->hqd", p.astype(jnp.bfloat16), v,
            preferred_element_type=jnp.float32)
        m_sc[...] = m_new

    if causal:
        # skip kv tiles that are entirely above the diagonal
        @pl.when(ki * block_kv < (qi + 1) * block_q)
        def _():
            _online_softmax_step()
    else:
        _online_softmax_step()

    @pl.when(ki == last_kv)
    def _finalize():
        inv_l = pl.reciprocal(l_sc[...], approx=True)        # (H, tq)
        attn = (acc_sc[...] * inv_l[..., None]).astype(jnp.bfloat16)  # (H,tq,d)
        # head-wise output projection against pre-split Wo (H, d, D): no concat
        out = jnp.dot(attn[0], wo_ref[0], preferred_element_type=jnp.float32)
        for h in range(1, n_heads):
            out = out + jnp.dot(attn[h], wo_ref[h],
                                preferred_element_type=jnp.float32)
        o_ref[0] = (xn_ref[0].astype(jnp.float32) + out).astype(o_ref.dtype)


# ----------------------------------------------------------------------------
# wrapper
# ----------------------------------------------------------------------------
def multi_head_attention(x, attn_mask, gamma, wq, wk, wv, wo, *,
                         n_heads, eps, block_q=None, block_kv=None,
                         block_proj=None, causal=False):
    """x: (B,S,D) f32. attn_mask: additive, (S,S)/(B,S,S)/(B,1,S,S)
    (head-broadcast), ignored when causal=True. Weights: (out,in) layout."""
    B, S, D = x.shape
    H = n_heads
    d = D // H

    block_q = block_q or _pick_block(S)
    block_kv = block_kv or _pick_block(S)
    block_proj = block_proj or _pick_block(S)
    assert S % block_q == 0 and S % block_kv == 0 and S % block_proj == 0
    nq, nkv, nproj = S // block_q, S // block_kv, S // block_proj

    # Host-side weight prep (once): pre-split per head, 1/sqrt(d) folded into Wq.
    wq_h = jnp.transpose((wq.T / sqrt(d)).reshape(D, H, d),
                         (1, 0, 2)).astype(jnp.bfloat16)      # (H, D, d)
    wk_h = jnp.transpose(wk.T.reshape(D, H, d), (1, 0, 2)).astype(jnp.bfloat16)
    wv_h = jnp.transpose(wv.T.reshape(D, H, d), (1, 0, 2)).astype(jnp.bfloat16)
    wo_h = wo.T.reshape(H, d, D).astype(jnp.bfloat16)         # (H, d, D)
    gamma2d = gamma.reshape(1, D).astype(jnp.float32)

    vmem_limit = _vmem_limit_bytes()

    # ------------------ Kernel 1: RMSNorm + QKV projection -------------------
    proj_kernel = functools.partial(_rmsnorm_qkv_kernel, n_heads=H, eps=eps)
    q_hsd, k_hsd, v_hsd, xn = pl.pallas_call(
        proj_kernel,
        out_shape=(
            jax.ShapeDtypeStruct((B, H, S, d), jnp.bfloat16),
            jax.ShapeDtypeStruct((B, H, S, d), jnp.bfloat16),
            jax.ShapeDtypeStruct((B, H, S, d), jnp.bfloat16),
            jax.ShapeDtypeStruct((B, S, D), x.dtype),
        ),
        grid_spec=pltpu.PrefetchScalarGridSpec(
            num_scalar_prefetch=0,
            grid=(B, nproj),
            in_specs=[
                pl.BlockSpec((1, block_proj, D), lambda b, si: (b, si, 0)),
                _const_spec((1, D), lambda b, si: (0, 0)),
                _const_spec((H, D, d), lambda b, si: (0, 0, 0)),
                _const_spec((H, D, d), lambda b, si: (0, 0, 0)),
                _const_spec((H, D, d), lambda b, si: (0, 0, 0)),
            ],
            out_specs=[
                pl.BlockSpec((1, H, block_proj, d), lambda b, si: (b, 0, si, 0)),
                pl.BlockSpec((1, H, block_proj, d), lambda b, si: (b, 0, si, 0)),
                pl.BlockSpec((1, H, block_proj, d), lambda b, si: (b, 0, si, 0)),
                pl.BlockSpec((1, block_proj, D), lambda b, si: (b, si, 0)),
            ],
        ),
        compiler_params=pltpu.CompilerParams(
            dimension_semantics=("parallel", "parallel"),
            vmem_limit_bytes=vmem_limit,
        ),
        cost_estimate=pl.CostEstimate(
            flops=int(6 * B * S * D * D),
            transcendentals=int(B * S),
            bytes_accessed=int(2 * B * S * D * 4 + 3 * B * S * D * 2
                               + 3 * D * D * 2),
        ),
    )(x, gamma2d, wq_h, wk_h, wv_h)

    # ------------------ Kernel 2: flash attention -----------------------------
    attn_kernel = functools.partial(
        _flash_attn_kernel, n_heads=H, block_q=block_q, block_kv=block_kv,
        causal=causal)

    in_specs = [
        pl.BlockSpec((1, H, block_q, d), lambda b, qi, ki: (b, 0, qi, 0)),   # Q
        pl.BlockSpec((1, H, block_kv, d), lambda b, qi, ki: (b, 0, ki, 0)),  # K
        pl.BlockSpec((1, H, block_kv, d), lambda b, qi, ki: (b, 0, ki, 0)),  # V
    ]
    operands = [q_hsd, k_hsd, v_hsd]
    if not causal:
        m = attn_mask
        if m.ndim == 2:
            m = jnp.broadcast_to(m[None], (B, S, S))
        elif m.ndim == 4:
            m = m[:, 0]            # head-broadcast masks only (see TODO above)
        m = m.astype(jnp.float32)
        in_specs.append(pl.BlockSpec((1, block_q, block_kv),
                                     lambda b, qi, ki: (b, qi, ki)))
        operands.append(m)
    in_specs += [
        pl.BlockSpec((1, block_q, D), lambda b, qi, ki: (b, qi, 0)),         # xn
        _const_spec((H, d, D), lambda b, qi, ki: (0, 0, 0)),                 # Wo
    ]
    operands += [xn, wo_h]

    flops = 4 * B * H * S * S * d + 2 * B * S * D * D
    transcendentals = B * H * S * S
    bytes_accessed = (B * H * S * d * 2 * (1 + 2 * nq)
                      + (0 if causal else B * S * S * 4)
                      + 2 * B * S * D * 4 + H * d * D * 2)

    return pl.pallas_call(
        attn_kernel,
        out_shape=jax.ShapeDtypeStruct((B, S, D), x.dtype),
        grid_spec=pltpu.PrefetchScalarGridSpec(
            num_scalar_prefetch=0,
            grid=(B, nq, nkv),
            in_specs=in_specs,
            out_specs=pl.BlockSpec((1, block_q, D),
                                   lambda b, qi, ki: (b, qi, 0)),
            scratch_shapes=[
                pltpu.VMEM((H, block_q), jnp.float32),       # m (lane-dense)
                pltpu.VMEM((H, block_q), jnp.float32),       # l (lane-dense)
                pltpu.VMEM((H, block_q, d), jnp.float32),    # acc
            ],
        ),
        compiler_params=pltpu.CompilerParams(
            dimension_semantics=("parallel", "parallel", "arbitrary"),
            vmem_limit_bytes=vmem_limit,
        ),
        cost_estimate=pl.CostEstimate(
            flops=int(flops),
            transcendentals=int(transcendentals),
            bytes_accessed=int(bytes_accessed),
        ),
    )(*operands)


# ----------------------------------------------------------------------------
# pure-JAX reference (mirrors the PyTorch forward, f32)
# ----------------------------------------------------------------------------
def _reference(x, attn_mask_bss, gamma, wq, wk, wv, wo, *, n_heads, eps):
    B, S, D = x.shape
    d = D // n_heads
    xn = x * jax.lax.rsqrt(jnp.mean(x * x, axis=-1, keepdims=True) + eps) * gamma
    q = (xn @ wq.T).reshape(B, S, n_heads, d).transpose(0, 2, 1, 3)
    k = (xn @ wk.T).reshape(B, S, n_heads, d).transpose(0, 2, 1, 3)
    v = (xn @ wv.T).reshape(B, S, n_heads, d).transpose(0, 2, 1, 3)
    scores = jnp.einsum("bhqd,bhkd->bhqk", q, k) / sqrt(d) + attn_mask_bss[:, None]
    probs = jax.nn.softmax(scores, axis=-1)
    attn = jnp.einsum("bhqk,bhkd->bhqd", probs, v)
    attn = attn.transpose(0, 2, 1, 3).reshape(B, S, D)
    return xn + attn @ wo.T


if __name__ == "__main__":
    B, S, D, H = 2, 8, 32, 4
    eps = 1e-6

    key = jax.random.PRNGKey(0)
    kx, kq, kk, kv, ko = jax.random.split(key, 5)

    x = jax.random.normal(kx, (B, S, D), dtype=jnp.float32)

    # deterministic "PyTorch-like" linear weights, shape (out, in), no bias
    bound = 1.0 / sqrt(D)
    wq = jax.random.uniform(kq, (D, D), jnp.float32, -bound, bound)
    wk = jax.random.uniform(kk, (D, D), jnp.float32, -bound, bound)
    wv = jax.random.uniform(kv, (D, D), jnp.float32, -bound, bound)
    wo = jax.random.uniform(ko, (D, D), jnp.float32, -bound, bound)
    gamma = jnp.ones((D,), jnp.float32)      # nn.RMSNorm default weight init

    # additive causal attention mask, head-broadcast: (B, S, S)
    causal_lower = jnp.tril(jnp.ones((S, S), jnp.float32))
    mask_bss = jnp.broadcast_to(jnp.where(causal_lower > 0, 0.0, -1e9),
                                (B, S, S)).astype(jnp.float32)

    ref = _reference(x, mask_bss, gamma, wq, wk, wv, wo, n_heads=H, eps=eps)

    # 1) general (data-driven) mask path
    out = multi_head_attention(x, mask_bss, gamma, wq, wk, wv, wo,
                               n_heads=H, eps=eps)
    out = jax.block_until_ready(out)
    assert jnp.allclose(out, ref, atol=5e-2, rtol=5e-2), "mask path mismatch"

    # 2) in-kernel causal path (no mask streamed, masked kv tiles skipped)
    out_c = multi_head_attention(x, None, gamma, wq, wk, wv, wo,
                                 n_heads=H, eps=eps, causal=True)
    out_c = jax.block_until_ready(out_c)
    assert jnp.allclose(out_c, ref, atol=5e-2, rtol=5e-2), "causal path mismatch"

    print("KERNEL_OK")
</pallas_src>

<mosaic_0001>
module attributes {stable_mosaic.version = 11 : i64} {
  func.func @_rmsnorm_qkv_kernel(%arg0: i32, %arg1: i32, %arg2: memref<1x8x32xf32, #tpu.memory_space<vmem>>, %arg3: memref<1x32xf32, #tpu.memory_space<vmem>>, %arg4: memref<4x32x8xbf16, #tpu.memory_space<vmem>>, %arg5: memref<4x32x8xbf16, #tpu.memory_space<vmem>>, %arg6: memref<4x32x8xbf16, #tpu.memory_space<vmem>>, %arg7: memref<1x4x8x8xbf16, #tpu.memory_space<vmem>>, %arg8: memref<1x4x8x8xbf16, #tpu.memory_space<vmem>>, %arg9: memref<1x4x8x8xbf16, #tpu.memory_space<vmem>>, %arg10: memref<1x8x32xf32, #tpu.memory_space<vmem>>) attributes {dimension_semantics = [#tpu.dimension_semantics<parallel>, #tpu.dimension_semantics<parallel>], iteration_bounds = array<i64: 2, 1>, scalar_prefetch = 0 : i64, scratch_operands = 0 : i64, tpu.core_type = #tpu.core_type<tc>, window_params = [{transform_indices = @transform_0, window_bounds = array<i64: 1, 8, 32>}, {pipeline_mode = #tpu.pipeline_mode<synchronous>, transform_indices = @transform_1, window_bounds = array<i64: 1, 32>}, {pipeline_mode = #tpu.pipeline_mode<synchronous>, transform_indices = @transform_2, window_bounds = array<i64: 4, 32, 8>}, {pipeline_mode = #tpu.pipeline_mode<synchronous>, transform_indices = @transform_3, window_bounds = array<i64: 4, 32, 8>}, {pipeline_mode = #tpu.pipeline_mode<synchronous>, transform_indices = @transform_4, window_bounds = array<i64: 4, 32, 8>}, {transform_indices = @transform_5, window_bounds = array<i64: 1, 4, 8, 8>}, {transform_indices = @transform_6, window_bounds = array<i64: 1, 4, 8, 8>}, {transform_indices = @transform_7, window_bounds = array<i64: 1, 4, 8, 8>}, {transform_indices = @transform_8, window_bounds = array<i64: 1, 8, 32>}]} {
    %c0 = arith.constant 0 : index
    %c0_0 = arith.constant 0 : index
    %c0_1 = arith.constant 0 : index
    %0 = vector.load %arg2[%c0, %c0_0, %c0_1] : memref<1x8x32xf32, #tpu.memory_space<vmem>>, vector<1x8x32xf32>
    %1 = vector.shape_cast %0 : vector<1x8x32xf32> to vector<8x32xf32>
    %c0_2 = arith.constant 0 : index
    %c0_3 = arith.constant 0 : index
    %2 = vector.load %arg3[%c0_2, %c0_3] : memref<1x32xf32, #tpu.memory_space<vmem>>, vector<1x32xf32>
    %3 = arith.mulf %1, %1 : vector<8x32xf32>
    %cst = arith.constant dense<0.000000e+00> : vector<8xf32>
    %4 = vector.multi_reduction <add>, %3, %cst [1] : vector<8x32xf32> to vector<8xf32>
    %5 = vector.shape_cast %4 : vector<8xf32> to vector<8x1xf32>
    %cst_4 = arith.constant 3.200000e+01 : f32
    %6 = vector.broadcast %cst_4 : f32 to vector<8x1xf32>
    %7 = arith.divf %5, %6 : vector<8x1xf32>
    %cst_5 = arith.constant 9.99999997E-7 : f32
    %8 = vector.broadcast %cst_5 : f32 to vector<8x1xf32>
    %9 = arith.addf %7, %8 : vector<8x1xf32>
    %10 = math.rsqrt %9 : vector<8x1xf32>
    %11 = vector.broadcast %10 : vector<8x1xf32> to vector<8x32xf32>
    %12 = arith.mulf %1, %11 : vector<8x32xf32>
    %13 = vector.broadcast %2 : vector<1x32xf32> to vector<8x32xf32>
    %14 = arith.mulf %12, %13 : vector<8x32xf32>
    %c0_6 = arith.constant 0 : index
    %c0_7 = arith.constant 0 : index
    %c0_8 = arith.constant 0 : index
    %15 = vector.load %arg10[%c0_6, %c0_7, %c0_8] : memref<1x8x32xf32, #tpu.memory_space<vmem>>, vector<1x8x32xf32>
    %16 = vector.shape_cast %15 : vector<1x8x32xf32> to vector<8x32xf32>
    %17 = vector.shape_cast %14 : vector<8x32xf32> to vector<1x8x32xf32>
    tpu.vector_store %arg10[%c0_6, %c0_7, %c0_8], %17 {strides = array<i32>} : memref<1x8x32xf32, #tpu.memory_space<vmem>>, vector<1x8x32xf32>,
    %18 = arith.truncf %14 : vector<8x32xf32> to vector<8x32xbf16>
    %c0_9 = arith.constant 0 : index
    %c0_10 = arith.constant 0 : index
    %c0_11 = arith.constant 0 : index
    %19 = vector.load %arg4[%c0_9, %c0_10, %c0_11] : memref<4x32x8xbf16, #tpu.memory_space<vmem>>, vector<1x32x8xbf16>
    %20 = vector.shape_cast %19 : vector<1x32x8xbf16> to vector<32x8xbf16>
    %cst_12 = arith.constant dense<0.000000e+00> : vector<8x8xf32>
    %21 = tpu.matmul %18, %20, %cst_12 {dimension_numbers = #tpu.dot_dimension_numbers<[1], [0], [0], [1], [0, 0, 1, 1], [], []>} : vector<8x32xbf16>, vector<32x8xbf16>, vector<8x8xf32> -> vector<8x8xf32>
    %22 = arith.truncf %21 : vector<8x8xf32> to vector<8x8xbf16>
    %c0_13 = arith.constant 0 : index
    %c0_14 = arith.constant 0 : index
    %c0_15 = arith.constant 0 : index
    %c0_16 = arith.constant 0 : index
    %23 = vector.load %arg7[%c0_13, %c0_14, %c0_15, %c0_16] : memref<1x4x8x8xbf16, #tpu.memory_space<vmem>>, vector<1x1x8x8xbf16>
    %24 = vector.shape_cast %23 : vector<1x1x8x8xbf16> to vector<8x8xbf16>
    %25 = vector.shape_cast %22 : vector<8x8xbf16> to vector<1x1x8x8xbf16>
    tpu.vector_store %arg7[%c0_13, %c0_14, %c0_15, %c0_16], %25 {strides = array<i32>} : memref<1x4x8x8xbf16, #tpu.memory_space<vmem>>, vector<1x1x8x8xbf16>,
    %c0_17 = arith.constant 0 : index
    %c0_18 = arith.constant 0 : index
    %c0_19 = arith.constant 0 : index
    %26 = vector.load %arg5[%c0_17, %c0_18, %c0_19] : memref<4x32x8xbf16, #tpu.memory_space<vmem>>, vector<1x32x8xbf16>
    %27 = vector.shape_cast %26 : vector<1x32x8xbf16> to vector<32x8xbf16>
    %cst_20 = arith.constant dense<0.000000e+00> : vector<8x8xf32>
    %28 = tpu.matmul %18, %27, %cst_20 {dimension_numbers = #tpu.dot_dimension_numbers<[1], [0], [0], [1], [0, 0, 1, 1], [], []>} : vector<8x32xbf16>, vector<32x8xbf16>, vector<8x8xf32> -> vector<8x8xf32>
    %29 = arith.truncf %28 : vector<8x8xf32> to vector<8x8xbf16>
    %c0_21 = arith.constant 0 : index
    %c0_22 = arith.constant 0 : index
    %c0_23 = arith.constant 0 : index
    %c0_24 = arith.constant 0 : index
    %30 = vector.load %arg8[%c0_21, %c0_22, %c0_23, %c0_24] : memref<1x4x8x8xbf16, #tpu.memory_space<vmem>>, vector<1x1x8x8xbf16>
    %31 = vector.shape_cast %30 : vector<1x1x8x8xbf16> to vector<8x8xbf16>
    %32 = vector.shape_cast %29 : vector<8x8xbf16> to vector<1x1x8x8xbf16>
    tpu.vector_store %arg8[%c0_21, %c0_22, %c0_23, %c0_24], %32 {strides = array<i32>} : memref<1x4x8x8xbf16, #tpu.memory_space<vmem>>, vector<1x1x8x8xbf16>,
    %c0_25 = arith.constant 0 : index
    %c0_26 = arith.constant 0 : index
    %c0_27 = arith.constant 0 : index
    %33 = vector.load %arg6[%c0_25, %c0_26, %c0_27] : memref<4x32x8xbf16, #tpu.memory_space<vmem>>, vector<1x32x8xbf16>
    %34 = vector.shape_cast %33 : vector<1x32x8xbf16> to vector<32x8xbf16>
    %cst_28 = arith.constant dense<0.000000e+00> : vector<8x8xf32>
    %35 = tpu.matmul %18, %34, %cst_28 {dimension_numbers = #tpu.dot_dimension_numbers<[1], [0], [0], [1], [0, 0, 1, 1], [], []>} : vector<8x32xbf16>, vector<32x8xbf16>, vector<8x8xf32> -> vector<8x8xf32>
    %36 = arith.truncf %35 : vector<8x8xf32> to vector<8x8xbf16>
    %c0_29 = arith.constant 0 : index
    %c0_30 = arith.constant 0 : index
    %c0_31 = arith.constant 0 : index
    %c0_32 = arith.constant 0 : index
    %37 = vector.load %arg9[%c0_29, %c0_30, %c0_31, %c0_32] : memref<1x4x8x8xbf16, #tpu.memory_space<vmem>>, vector<1x1x8x8xbf16>
    %38 = vector.shape_cast %37 : vector<1x1x8x8xbf16> to vector<8x8xbf16>
    %39 = vector.shape_cast %36 : vector<8x8xbf16> to vector<1x1x8x8xbf16>
    tpu.vector_store %arg9[%c0_29, %c0_30, %c0_31, %c0_32], %39 {strides = array<i32>} : memref<1x4x8x8xbf16, #tpu.memory_space<vmem>>, vector<1x1x8x8xbf16>,
    %c1 = arith.constant 1 : index
    %c0_33 = arith.constant 0 : index
    %c0_34 = arith.constant 0 : index
    %40 = vector.load %arg4[%c1, %c0_33, %c0_34] : memref<4x32x8xbf16, #tpu.memory_space<vmem>>, vector<1x32x8xbf16>
    %41 = vector.shape_cast %40 : vector<1x32x8xbf16> to vector<32x8xbf16>
    %cst_35 = arith.constant dense<0.000000e+00> : vector<8x8xf32>
    %42 = tpu.matmul %18, %41, %cst_35 {dimension_numbers = #tpu.dot_dimension_numbers<[1], [0], [0], [1], [0, 0, 1, 1], [], []>} : vector<8x32xbf16>, vector<32x8xbf16>, vector<8x8xf32> -> vector<8x8xf32>
    %43 = arith.truncf %42 : vector<8x8xf32> to vector<8x8xbf16>
    %c0_36 = arith.constant 0 : index
    %c1_37 = arith.constant 1 : index
    %c0_38 = arith.constant 0 : index
    %c0_39 = arith.constant 0 : index
    %44 = vector.load %arg7[%c0_36, %c1_37, %c0_38, %c0_39] : memref<1x4x8x8xbf16, #tpu.memory_space<vmem>>, vector<1x1x8x8xbf16>
    %45 = vector.shape_cast %44 : vector<1x1x8x8xbf16> to vector<8x8xbf16>
    %46 = vector.shape_cast %43 : vector<8x8xbf16> to vector<1x1x8x8xbf16>
    tpu.vector_store %arg7[%c0_36, %c1_37, %c0_38, %c0_39], %46 {strides = array<i32>} : memref<1x4x8x8xbf16, #tpu.memory_space<vmem>>, vector<1x1x8x8xbf16>,
    %c1_40 = arith.constant 1 : index
    %c0_41 = arith.constant 0 : index
    %c0_42 = arith.constant 0 : index
    %47 = vector.load %arg5[%c1_40, %c0_41, %c0_42] : memref<4x32x8xbf16, #tpu.memory_space<vmem>>, vector<1x32x8xbf16>
    %48 = vector.shape_cast %47 : vector<1x32x8xbf16> to vector<32x8xbf16>
    %cst_43 = arith.constant dense<0.000000e+00> : vector<8x8xf32>
    %49 = tpu.matmul %18, %48, %cst_43 {dimension_numbers = #tpu.dot_dimension_numbers<[1], [0], [0], [1], [0, 0, 1, 1], [], []>} : vector<8x32xbf16>, vector<32x8xbf16>, vector<8x8xf32> -> vector<8x8xf32>
    %50 = arith.truncf %49 : vector<8x8xf32> to vector<8x8xbf16>
    %c0_44 = arith.constant 0 : index
    %c1_45 = arith.constant 1 : index
    %c0_46 = arith.constant 0 : index
    %c0_47 = arith.constant 0 : index
    %51 = vector.load %arg8[%c0_44, %c1_45, %c0_46, %c0_47] : memref<1x4x8x8xbf16, #tpu.memory_space<vmem>>, vector<1x1x8x8xbf16>
    %52 = vector.shape_cast %51 : vector<1x1x8x8xbf16> to vector<8x8xbf16>
    %53 = vector.shape_cast %50 : vector<8x8xbf16> to vector<1x1x8x8xbf16>
    tpu.vector_store %arg8[%c0_44, %c1_45, %c0_46, %c0_47], %53 {strides = array<i32>} : memref<1x4x8x8xbf16, #tpu.memory_space<vmem>>, vector<1x1x8x8xbf16>,
    %c1_48 = arith.constant 1 : index
    %c0_49 = arith.constant 0 : index
    %c0_50 = arith.constant 0 : index
    %54 = vector.load %arg6[%c1_48, %c0_49, %c0_50] : memref<4x32x8xbf16, #tpu.memory_space<vmem>>, vector<1x32x8xbf16>
    %55 = vector.shape_cast %54 : vector<1x32x8xbf16> to vector<32x8xbf16>
    %cst_51 = arith.constant dense<0.000000e+00> : vector<8x8xf32>
    %56 = tpu.matmul %18, %55, %cst_51 {dimension_numbers = #tpu.dot_dimension_numbers<[1], [0], [0], [1], [0, 0, 1, 1], [], []>} : vector<8x32xbf16>, vector<32x8xbf16>, vector<8x8xf32> -> vector<8x8xf32>
    %57 = arith.truncf %56 : vector<8x8xf32> to vector<8x8xbf16>
    %c0_52 = arith.constant 0 : index
    %c1_53 = arith.constant 1 : index
    %c0_54 = arith.constant 0 : index
    %c0_55 = arith.constant 0 : index
    %58 = vector.load %arg9[%c0_52, %c1_53, %c0_54, %c0_55] : memref<1x4x8x8xbf16, #tpu.memory_space<vmem>>, vector<1x1x8x8xbf16>
    %59 = vector.shape_cast %58 : vector<1x1x8x8xbf16> to vector<8x8xbf16>
    %60 = vector.shape_cast %57 : vector<8x8xbf16> to vector<1x1x8x8xbf16>
    tpu.vector_store %arg9[%c0_52, %c1_53, %c0_54, %c0_55], %60 {strides = array<i32>} : memref<1x4x8x8xbf16, #tpu.memory_space<vmem>>, vector<1x1x8x8xbf16>,
    %c2 = arith.constant 2 : index
    %c0_56 = arith.constant 0 : index
    %c0_57 = arith.constant 0 : index
    %61 = vector.load %arg4[%c2, %c0_56, %c0_57] : memref<4x32x8xbf16, #tpu.memory_space<vmem>>, vector<1x32x8xbf16>
    %62 = vector.shape_cast %61 : vector<1x32x8xbf16> to vector<32x8xbf16>
    %cst_58 = arith.constant dense<0.000000e+00> : vector<8x8xf32>
    %63 = tpu.matmul %18, %62, %cst_58 {dimension_numbers = #tpu.dot_dimension_numbers<[1], [0], [0], [1], [0, 0, 1, 1], [], []>} : vector<8x32xbf16>, vector<32x8xbf16>, vector<8x8xf32> -> vector<8x8xf32>
    %64 = arith.truncf %63 : vector<8x8xf32> to vector<8x8xbf16>
    %c0_59 = arith.constant 0 : index
    %c2_60 = arith.constant 2 : index
    %c0_61 = arith.constant 0 : index
    %c0_62 = arith.constant 0 : index
    %65 = vector.load %arg7[%c0_59, %c2_60, %c0_61, %c0_62] : memref<1x4x8x8xbf16, #tpu.memory_space<vmem>>, vector<1x1x8x8xbf16>
    %66 = vector.shape_cast %65 : vector<1x1x8x8xbf16> to vector<8x8xbf16>
    %67 = vector.shape_cast %64 : vector<8x8xbf16> to vector<1x1x8x8xbf16>
    tpu.vector_store %arg7[%c0_59, %c2_60, %c0_61, %c0_62], %67 {strides = array<i32>} : memref<1x4x8x8xbf16, #tpu.memory_space<vmem>>, vector<1x1x8x8xbf16>,
    %c2_63 = arith.constant 2 : index
    %c0_64 = arith.constant 0 : index
    %c0_65 = arith.constant 0 : index
    %68 = vector.load %arg5[%c2_63, %c0_64, %c0_65] : memref<4x32x8xbf16, #tpu.memory_space<vmem>>, vector<1x32x8xbf16>
    %69 = vector.shape_cast %68 : vector<1x32x8xbf16> to vector<32x8xbf16>
    %cst_66 = arith.constant dense<0.000000e+00> : vector<8x8xf32>
    %70 = tpu.matmul %18, %69, %cst_66 {dimension_numbers = #tpu.dot_dimension_numbers<[1], [0], [0], [1], [0, 0, 1, 1], [], []>} : vector<8x32xbf16>, vector<32x8xbf16>, vector<8x8xf32> -> vector<8x8xf32>
    %71 = arith.truncf %70 : vector<8x8xf32> to vector<8x8xbf16>
    %c0_67 = arith.constant 0 : index
    %c2_68 = arith.constant 2 : index
    %c0_69 = arith.constant 0 : index
    %c0_70 = arith.constant 0 : index
    %72 = vector.load %arg8[%c0_67, %c2_68, %c0_69, %c0_70] : memref<1x4x8x8xbf16, #tpu.memory_space<vmem>>, vector<1x1x8x8xbf16>
    %73 = vector.shape_cast %72 : vector<1x1x8x8xbf16> to vector<8x8xbf16>
    %74 = vector.shape_cast %71 : vector<8x8xbf16> to vector<1x1x8x8xbf16>
    tpu.vector_store %arg8[%c0_67, %c2_68, %c0_69, %c0_70], %74 {strides = array<i32>} : memref<1x4x8x8xbf16, #tpu.memory_space<vmem>>, vector<1x1x8x8xbf16>,
    %c2_71 = arith.constant 2 : index
    %c0_72 = arith.constant 0 : index
    %c0_73 = arith.constant 0 : index
    %75 = vector.load %arg6[%c2_71, %c0_72, %c0_73] : memref<4x32x8xbf16, #tpu.memory_space<vmem>>, vector<1x32x8xbf16>
    %76 = vector.shape_cast %75 : vector<1x32x8xbf16> to vector<32x8xbf16>
    %cst_74 = arith.constant dense<0.000000e+00> : vector<8x8xf32>
    %77 = tpu.matmul %18, %76, %cst_74 {dimension_numbers = #tpu.dot_dimension_numbers<[1], [0], [0], [1], [0, 0, 1, 1], [], []>} : vector<8x32xbf16>, vector<32x8xbf16>, vector<8x8xf32> -> vector<8x8xf32>
    %78 = arith.truncf %77 : vector<8x8xf32> to vector<8x8xbf16>
    %c0_75 = arith.constant 0 : index
    %c2_76 = arith.constant 2 : index
    %c0_77 = arith.constant 0 : index
    %c0_78 = arith.constant 0 : index
    %79 = vector.load %arg9[%c0_75, %c2_76, %c0_77, %c0_78] : memref<1x4x8x8xbf16, #tpu.memory_space<vmem>>, vector<1x1x8x8xbf16>
    %80 = vector.shape_cast %79 : vector<1x1x8x8xbf16> to vector<8x8xbf16>
    %81 = vector.shape_cast %78 : vector<8x8xbf16> to vector<1x1x8x8xbf16>
    tpu.vector_store %arg9[%c0_75, %c2_76, %c0_77, %c0_78], %81 {strides = array<i32>} : memref<1x4x8x8xbf16, #tpu.memory_space<vmem>>, vector<1x1x8x8xbf16>,
    %c3 = arith.constant 3 : index
    %c0_79 = arith.constant 0 : index
    %c0_80 = arith.constant 0 : index
    %82 = vector.load %arg4[%c3, %c0_79, %c0_80] : memref<4x32x8xbf16, #tpu.memory_space<vmem>>, vector<1x32x8xbf16>
    %83 = vector.shape_cast %82 : vector<1x32x8xbf16> to vector<32x8xbf16>
    %cst_81 = arith.constant dense<0.000000e+00> : vector<8x8xf32>
    %84 = tpu.matmul %18, %83, %cst_81 {dimension_numbers = #tpu.dot_dimension_numbers<[1], [0], [0], [1], [0, 0, 1, 1], [], []>} : vector<8x32xbf16>, vector<32x8xbf16>, vector<8x8xf32> -> vector<8x8xf32>
    %85 = arith.truncf %84 : vector<8x8xf32> to vector<8x8xbf16>
    %c0_82 = arith.constant 0 : index
    %c3_83 = arith.constant 3 : index
    %c0_84 = arith.constant 0 : index
    %c0_85 = arith.constant 0 : index
    %86 = vector.load %arg7[%c0_82, %c3_83, %c0_84, %c0_85] : memref<1x4x8x8xbf16, #tpu.memory_space<vmem>>, vector<1x1x8x8xbf16>
    %87 = vector.shape_cast %86 : vector<1x1x8x8xbf16> to vector<8x8xbf16>
    %88 = vector.shape_cast %85 : vector<8x8xbf16> to vector<1x1x8x8xbf16>
    tpu.vector_store %arg7[%c0_82, %c3_83, %c0_84, %c0_85], %88 {strides = array<i32>} : memref<1x4x8x8xbf16, #tpu.memory_space<vmem>>, vector<1x1x8x8xbf16>,
    %c3_86 = arith.constant 3 : index
    %c0_87 = arith.constant 0 : index
    %c0_88 = arith.constant 0 : index
    %89 = vector.load %arg5[%c3_86, %c0_87, %c0_88] : memref<4x32x8xbf16, #tpu.memory_space<vmem>>, vector<1x32x8xbf16>
    %90 = vector.shape_cast %89 : vector<1x32x8xbf16> to vector<32x8xbf16>
    %cst_89 = arith.constant dense<0.000000e+00> : vector<8x8xf32>
    %91 = tpu.matmul %18, %90, %cst_89 {dimension_numbers = #tpu.dot_dimension_numbers<[1], [0], [0], [1], [0, 0, 1, 1], [], []>} : vector<8x32xbf16>, vector<32x8xbf16>, vector<8x8xf32> -> vector<8x8xf32>
    %92 = arith.truncf %91 : vector<8x8xf32> to vector<8x8xbf16>
    %c0_90 = arith.constant 0 : index
    %c3_91 = arith.constant 3 : index
    %c0_92 = arith.constant 0 : index
    %c0_93 = arith.constant 0 : index
    %93 = vector.load %arg8[%c0_90, %c3_91, %c0_92, %c0_93] : memref<1x4x8x8xbf16, #tpu.memory_space<vmem>>, vector<1x1x8x8xbf16>
    %94 = vector.shape_cast %93 : vector<1x1x8x8xbf16> to vector<8x8xbf16>
    %95 = vector.shape_cast %92 : vector<8x8xbf16> to vector<1x1x8x8xbf16>
    tpu.vector_store %arg8[%c0_90, %c3_91, %c0_92, %c0_93], %95 {strides = array<i32>} : memref<1x4x8x8xbf16, #tpu.memory_space<vmem>>, vector<1x1x8x8xbf16>,
    %c3_94 = arith.constant 3 : index
    %c0_95 = arith.constant 0 : index
    %c0_96 = arith.constant 0 : index
    %96 = vector.load %arg6[%c3_94, %c0_95, %c0_96] : memref<4x32x8xbf16, #tpu.memory_space<vmem>>, vector<1x32x8xbf16>
    %97 = vector.shape_cast %96 : vector<1x32x8xbf16> to vector<32x8xbf16>
    %cst_97 = arith.constant dense<0.000000e+00> : vector<8x8xf32>
    %98 = tpu.matmul %18, %97, %cst_97 {dimension_numbers = #tpu.dot_dimension_numbers<[1], [0], [0], [1], [0, 0, 1, 1], [], []>} : vector<8x32xbf16>, vector<32x8xbf16>, vector<8x8xf32> -> vector<8x8xf32>
    %99 = arith.truncf %98 : vector<8x8xf32> to vector<8x8xbf16>
    %c0_98 = arith.constant 0 : index
    %c3_99 = arith.constant 3 : index
    %c0_100 = arith.constant 0 : index
    %c0_101 = arith.constant 0 : index
    %100 = vector.load %arg9[%c0_98, %c3_99, %c0_100, %c0_101] : memref<1x4x8x8xbf16, #tpu.memory_space<vmem>>, vector<1x1x8x8xbf16>
    %101 = vector.shape_cast %100 : vector<1x1x8x8xbf16> to vector<8x8xbf16>
    %102 = vector.shape_cast %99 : vector<8x8xbf16> to vector<1x1x8x8xbf16>
    tpu.vector_store %arg9[%c0_98, %c3_99, %c0_100, %c0_101], %102 {strides = array<i32>} : memref<1x4x8x8xbf16, #tpu.memory_space<vmem>>, vector<1x1x8x8xbf16>,
    return
  }
  func.func @transform_0(%arg0: i32, %arg1: i32) -> (i32, i32, i32) {
    %c0_i32 = arith.constant 0 : i32
    %c0_i32_0 = arith.constant 0 : i32
    return %arg0, %arg1, %c0_i32 : i32, i32, i32
  }
  func.func @transform_1(%arg0: i32, %arg1: i32) -> (i32, i32) {
    %c0_i32 = arith.constant 0 : i32
    %c0_i32_0 = arith.constant 0 : i32
    %c0_i32_1 = arith.constant 0 : i32
    return %c0_i32, %c0_i32_0 : i32, i32
  }
  func.func @transform_2(%arg0: i32, %arg1: i32) -> (i32, i32, i32) {
    %c0_i32 = arith.constant 0 : i32
    %c0_i32_0 = arith.constant 0 : i32
    %c0_i32_1 = arith.constant 0 : i32
    %c0_i32_2 = arith.constant 0 : i32
    return %c0_i32, %c0_i32_0, %c0_i32_1 : i32, i32, i32
  }
  func.func @transform_3(%arg0: i32, %arg1: i32) -> (i32, i32, i32) {
    %c0_i32 = arith.constant 0 : i32
    %c0_i32_0 = arith.constant 0 : i32
    %c0_i32_1 = arith.constant 0 : i32
    %c0_i32_2 = arith.constant 0 : i32
    return %c0_i32, %c0_i32_0, %c0_i32_1 : i32, i32, i32
  }
  func.func @transform_4(%arg0: i32, %arg1: i32) -> (i32, i32, i32) {
    %c0_i32 = arith.constant 0 : i32
    %c0_i32_0 = arith.constant 0 : i32
    %c0_i32_1 = arith.constant 0 : i32
    %c0_i32_2 = arith.constant 0 : i32
    return %c0_i32, %c0_i32_0, %c0_i32_1 : i32, i32, i32
  }
  func.func @transform_5(%arg0: i32, %arg1: i32) -> (i32, i32, i32, i32) {
    %c0_i32 = arith.constant 0 : i32
    %c0_i32_0 = arith.constant 0 : i32
    %c0_i32_1 = arith.constant 0 : i32
    return %arg0, %c0_i32, %arg1, %c0_i32_0 : i32, i32, i32, i32
  }
  func.func @transform_6(%arg0: i32, %arg1: i32) -> (i32, i32, i32, i32) {
    %c0_i32 = arith.constant 0 : i32
    %c0_i32_0 = arith.constant 0 : i32
    %c0_i32_1 = arith.constant 0 : i32
    return %arg0, %c0_i32, %arg1, %c0_i32_0 : i32, i32, i32, i32
  }
  func.func @transform_7(%arg0: i32, %arg1: i32) -> (i32, i32, i32, i32) {
    %c0_i32 = arith.constant 0 : i32
    %c0_i32_0 = arith.constant 0 : i32
    %c0_i32_1 = arith.constant 0 : i32
    return %arg0, %c0_i32, %arg1, %c0_i32_0 : i32, i32, i32, i32
  }
  func.func @transform_8(%arg0: i32, %arg1: i32) -> (i32, i32, i32) {
    %c0_i32 = arith.constant 0 : i32
    %c0_i32_0 = arith.constant 0 : i32
    return %arg0, %arg1, %c0_i32 : i32, i32, i32
  }
}

</mosaic_0001>

<llo_original>
// kernel: tpu_custom_call.1
$region0: #{tpu_custom_call.1}
  #allocation0 [shape = 'u32[]', space=smem, size = 0x4, offset = 0x4, fixed_abs, tag = 'smem constant byte address 0x4 - core index']
  #allocation1 [shape = 'u32[144,128]{1,0:T(1,128)}', space=vmem, size = 0x12000, scoped, tag = 'internal scratch']
  %s0 = inlined_call_operand.hbm [shape: f32[2,8,32], index: 0, kind: input, shape index: {}]
  %s1 = inlined_call_operand.hbm [shape: f32[1,32], index: 1, kind: input, shape index: {}]
  %s2 = inlined_call_operand.hbm [shape: bf16[4,32,8], index: 2, kind: input, shape index: {}]
  %s3 = inlined_call_operand.hbm [shape: bf16[4,32,8], index: 3, kind: input, shape index: {}]
  %s4 = inlined_call_operand.hbm [shape: bf16[4,32,8], index: 4, kind: input, shape index: {}]
  %s5 = inlined_call_operand.hbm [shape: bf16[2,4,8,8], index: 5, kind: output, shape index: {0}]
  %s6 = inlined_call_operand.hbm [shape: bf16[2,4,8,8], index: 6, kind: output, shape index: {1}]
  %s7 = inlined_call_operand.hbm [shape: bf16[2,4,8,8], index: 7, kind: output, shape index: {2}]
  %s8 = inlined_call_operand.hbm [shape: f32[2,8,32], index: 8, kind: output, shape index: {3}]
  %9 = xla_tuple %s5, %s6, %s7, %s8
  %s10 = sld [smem:[#allocation0]]
  $region97: #{tpu_custom_call.1} parent=0
    _
  %s12 = ssub.s32 1, %s10
  %s13 = scalar_select 0, %s12, %s10
  $region1: #{tpu_custom_call.1} parent=0
    #allocation2 [shape = 'u8[8192]{0}', space=vmem, size = 0x2000, scoped, tag = 'input window, operand 0']
    #allocation3 [shape = 's32[2]{0}', space=sflag, size = 0x8, scoped, tag = 'scoped memory for tpu_custom_call.1']
    #allocation4 [shape = 's32[2]{0}', space=sflag, size = 0x8, scoped, tag = 'scoped memory for tpu_custom_call.1']
    #allocation5 [shape = 'u8[512]{0}', space=vmem, size = 0x400, scoped, tag = 'input window, operand 1, single buffered']
    #allocation6 [shape = 's32[1]{0}', space=sflag, size = 0x4, scoped, tag = 'scoped memory for tpu_custom_call.1']
    #allocation7 [shape = 'u8[32768]{0}', space=vmem, size = 0x8000, scoped, tag = 'input window, operand 2, single buffered']
    #allocation8 [shape = 'u8[32768]{0}', space=vmem, size = 0x8000, scoped, tag = 'input window, operand 3, single buffered']
    #allocation9 [shape = 's32[1]{0}', space=sflag, size = 0x4, scoped, tag = 'scoped memory for tpu_custom_call.1']
    #allocation10 [shape = 'u8[32768]{0}', space=vmem, size = 0x8000, scoped, tag = 'input window, operand 4, single buffered']
    #allocation11 [shape = 'u8[16384]{0}', space=vmem, size = 0x4000, scoped, tag = 'output window, operand 0']
    #allocation12 [shape = 'u8[16384]{0}', space=vmem, size = 0x4000, scoped, tag = 'output window, operand 1']
    #allocation13 [shape = 's32[2]{0}', space=sflag, size = 0x8, scoped, tag = 'scoped memory for tpu_custom_call.1']
    #allocation14 [shape = 'u8[16384]{0}', space=vmem, size = 0x4000, scoped, tag = 'output window, operand 2']
    #allocation15 [shape = 'u8[8192]{0}', space=vmem, size = 0x2000, scoped, tag = 'output window, operand 3']
    #allocation16 [shape = 's32[2]{0}', space=sflag, size = 0x8, scoped, tag = 'scoped memory for tpu_custom_call.1']
    %14 = vsyncpa [#allocation3], 0
    %s15 = scalar_lea.sflag [#allocation3], 1
    %16 = vsyncpa %s15, 0
    %17 = vsyncpa [#allocation6], 0
    %18 = vsyncpa [#allocation9], 0
    %19 = vsyncpa [#allocation4], 0
    %s20 = scalar_lea.sflag [#allocation4], 1
    %21 = vsyncpa %s20, 0
    %22 = vsyncpa [#allocation13], 0
    %s23 = scalar_lea.sflag [#allocation13], 1
    %24 = vsyncpa %s23, 0
    %25 = vsyncpa [#allocation16], 0
    %s26 = scalar_lea.sflag [#allocation16], 1
    %27 = vsyncpa %s26, 0
    loop: start=0, step=1, limit=4
    $region2: #{tpu_custom_call.1} parent=1 // loop_pre_header
      _
    $region3: #{tpu_custom_call.1} parent=1 // loop_header
      %s29 = sphi 0, %s33
      %p30 = scmp.ge.s32.totalorder %s29, 4
      %s36 = sphi 0, %s48
      %s37 = sphi 0, %s44
      %s38 = sphi 0, %s36
      %s39 = sphi 0, %s37
      %s40 = sphi 0, %s38
      %s41 = sphi 0, %s39
      %s53 = sphi 0, %s55
      %s56 = sphi 0, %s53
      %s57 = sphi 0, %s56
      %s73 = sphi 0, %s57
      %s77 = sphi 0, %s77
      %s79 = sphi 0, %s77
      %s80 = sphi 0, %s79
      %s94 = sphi 0, %s80
      %s98 = sphi 0, %s98
      %s100 = sphi 0, %s98
      %s101 = sphi 0, %s100
      %s115 = sphi 0, %s101
      %s119 = sphi 0, %s119
      %s121 = sphi 0, %s119
      %s122 = sphi 0, %s121
      %s136 = sphi 0, %s122
      %s140 = sphi 0, %s140
      %s142 = sphi 0, %s140
      %s143 = sphi 0, %s142
      %s157 = sphi 0, %s143
      %s165 = sphi 0, %s167
      %s168 = sphi 0, %s165
      %s169 = sphi 0, %s168
      %s185 = sphi 0, %s169
      %s193 = sphi 0, %s195
      %s196 = sphi 0, %s193
      %s197 = sphi 0, %s196
      %s213 = sphi 0, %s197
      %s221 = sphi 0, %s223
      %s224 = sphi 0, %s221
      %s225 = sphi 0, %s224
      %s241 = sphi 0, %s225
      %s249 = sphi 0, %s251
      %s252 = sphi 0, %s249
      %s253 = sphi 0, %s252
      %s269 = sphi 0, %s253
    $region4: #{tpu_custom_call.1} parent=1 // loop_header_branch
      %32 = sbr.rel (%p30) target = $region8
    $region5: #{tpu_custom_call.1} parent=1 // loop_body
      %s34 = ssub.s32 %s29, 1
      %s35 = ssub.s32 %s29, 2
      %s42 = sadd.s32 1, %s37
      %p43 = scmp.ge.s32.totalorder %s42, 1
      %s44 = scalar_select %p43, 0, %s42
      %s45 = sadd.s32 1, %s36
      %s46 = scalar_select %p43, %s45, %s36
      %p47 = scmp.ge.s32.totalorder %s46, 2
      %s48 = scalar_select %p47, 0, %s46
      %s49 = ssub.s32 %s36, %s48
      %s50 = ssub.s32 %s37, %s44
      %s51 = sor.u32 %s49, %s50
      %p52 = scmp.eq.s32.totalorder %s51, 0
      %s54 = sadd.s32 %s53, 1
      %s55 = scalar_select %p52, %s53, %s54
      %p58 = pneg %p52
      %p59 = scmp.eq.s32.totalorder %s29, 1
      %p60 = por %p58, %p59
      %p61 = scmp.ne.s32.totalorder %s53, %s56
      %p62 = scmp.eq.s32.totalorder %s29, 0
      %p63 = por %p61, %p62
      %p64 = scmp.ne.s32.totalorder %s53, %s56
      %p65 = scmp.eq.s32.totalorder %s34, 1
      %p66 = por %p64, %p65
      %p67 = scmp.ne.s32.totalorder %s56, %s57
      %p68 = scmp.eq.s32.totalorder %s34, 0
      %p69 = por %p67, %p68
      %p70 = scmp.ne.s32.totalorder %s56, %s57
      %p71 = scmp.eq.s32.totalorder %s35, 1
      %p72 = por %p70, %p71
      %p74 = scmp.ne.s32.totalorder %s57, %s73
      %p75 = scmp.eq.s32.totalorder %s35, 0
      %p76 = por %p74, %p75
      %s78 = sadd.s32 %s77, 1
      %p81 = scmp.eq.s32.totalorder %s29, 1
      %p82 = scmp.ne.s32.totalorder %s77, %s79
      %p83 = scmp.eq.s32.totalorder %s29, 0
      %p84 = por %p82, %p83
      %p85 = scmp.ne.s32.totalorder %s77, %s79
      %p86 = scmp.eq.s32.totalorder %s34, 1
      %p87 = por %p85, %p86
      %p88 = scmp.ne.s32.totalorder %s79, %s80
      %p89 = scmp.eq.s32.totalorder %s34, 0
      %p90 = por %p88, %p89
      %p91 = scmp.ne.s32.totalorder %s79, %s80
      %p92 = scmp.eq.s32.totalorder %s35, 1
      %p93 = por %p91, %p92
      %p95 = scmp.ne.s32.totalorder %s80, %s94
      %p96 = scmp.eq.s32.totalorder %s35, 0
      %p97 = por %p95, %p96
      %s99 = sadd.s32 %s98, 1
      %p102 = scmp.eq.s32.totalorder %s29, 1
      %p103 = scmp.ne.s32.totalorder %s98, %s100
      %p104 = scmp.eq.s32.totalorder %s29, 0
      %p105 = por %p103, %p104
      %p106 = scmp.ne.s32.totalorder %s98, %s100
      %p107 = scmp.eq.s32.totalorder %s34, 1
      %p108 = por %p106, %p107
      %p109 = scmp.ne.s32.totalorder %s100, %s101
      %p110 = scmp.eq.s32.totalorder %s34, 0
      %p111 = por %p109, %p110
      %p112 = scmp.ne.s32.totalorder %s100, %s101
      %p113 = scmp.eq.s32.totalorder %s35, 1
      %p114 = por %p112, %p113
      %p116 = scmp.ne.s32.totalorder %s101, %s115
      %p117 = scmp.eq.s32.totalorder %s35, 0
      %p118 = por %p116, %p117
      %s120 = sadd.s32 %s119, 1
      %p123 = scmp.eq.s32.totalorder %s29, 1
      %p124 = scmp.ne.s32.totalorder %s119, %s121
      %p125 = scmp.eq.s32.totalorder %s29, 0
      %p126 = por %p124, %p125
      %p127 = scmp.ne.s32.totalorder %s119, %s121
      %p128 = scmp.eq.s32.totalorder %s34, 1
      %p129 = por %p127, %p128
      %p130 = scmp.ne.s32.totalorder %s121, %s122
      %p131 = scmp.eq.s32.totalorder %s34, 0
      %p132 = por %p130, %p131
      %p133 = scmp.ne.s32.totalorder %s121, %s122
      %p134 = scmp.eq.s32.totalorder %s35, 1
      %p135 = por %p133, %p134
      %p137 = scmp.ne.s32.totalorder %s122, %s136
      %p138 = scmp.eq.s32.totalorder %s35, 0
      %p139 = por %p137, %p138
      %s141 = sadd.s32 %s140, 1
      %p144 = scmp.eq.s32.totalorder %s29, 1
      %p145 = scmp.ne.s32.totalorder %s140, %s142
      %p146 = scmp.eq.s32.totalorder %s29, 0
      %p147 = por %p145, %p146
      %p148 = scmp.ne.s32.totalorder %s140, %s142
      %p149 = scmp.eq.s32.totalorder %s34, 1
      %p150 = por %p148, %p149
      %p151 = scmp.ne.s32.totalorder %s142, %s143
      %p152 = scmp.eq.s32.totalorder %s34, 0
      %p153 = por %p151, %p152
      %p154 = scmp.ne.s32.totalorder %s142, %s143
      %p155 = scmp.eq.s32.totalorder %s35, 1
      %p156 = por %p154, %p155
      %p158 = scmp.ne.s32.totalorder %s143, %s157
      %p159 = scmp.eq.s32.totalorder %s35, 0
      %p160 = por %p158, %p159
      %s161 = ssub.s32 %s36, %s48
      %s162 = ssub.s32 %s37, %s44
      %s163 = sor.u32 %s161, %s162
      %p164 = scmp.eq.s32.totalorder %s163, 0
      %s166 = sadd.s32 %s165, 1
      %s167 = scalar_select %p164, %s165, %s166
      %p170 = pneg %p164
      %p171 = scmp.eq.s32.totalorder %s29, 1
      %p172 = por %p170, %p171
      %p173 = scmp.ne.s32.totalorder %s165, %s168
      %p174 = scmp.eq.s32.totalorder %s29, 0
      %p175 = por %p173, %p174
      %p176 = scmp.ne.s32.totalorder %s165, %s168
      %p177 = scmp.eq.s32.totalorder %s34, 1
      %p178 = por %p176, %p177
      %p179 = scmp.ne.s32.totalorder %s168, %s169
      %p180 = scmp.eq.s32.totalorder %s34, 0
      %p181 = por %p179, %p180
      %p182 = scmp.ne.s32.totalorder %s168, %s169
      %p183 = scmp.eq.s32.totalorder %s35, 1
      %p184 = por %p182, %p183
      %p186 = scmp.ne.s32.totalorder %s169, %s185
      %p187 = scmp.eq.s32.totalorder %s35, 0
      %p188 = por %p186, %p187
      %s189 = ssub.s32 %s36, %s48
      %s190 = ssub.s32 %s37, %s44
      %s191 = sor.u32 %s189, %s190
      %p192 = scmp.eq.s32.totalorder %s191, 0
      %s194 = sadd.s32 %s193, 1
      %s195 = scalar_select %p192, %s193, %s194
      %p198 = pneg %p192
      %p199 = scmp.eq.s32.totalorder %s29, 1
      %p200 = por %p198, %p199
      %p201 = scmp.ne.s32.totalorder %s193, %s196
      %p202 = scmp.eq.s32.totalorder %s29, 0
      %p203 = por %p201, %p202
      %p204 = scmp.ne.s32.totalorder %s193, %s196
      %p205 = scmp.eq.s32.totalorder %s34, 1
      %p206 = por %p204, %p205
      %p207 = scmp.ne.s32.totalorder %s196, %s197
      %p208 = scmp.eq.s32.totalorder %s34, 0
      %p209 = por %p207, %p208
      %p210 = scmp.ne.s32.totalorder %s196, %s197
      %p211 = scmp.eq.s32.totalorder %s35, 1
      %p212 = por %p210, %p211
      %p214 = scmp.ne.s32.totalorder %s197, %s213
      %p215 = scmp.eq.s32.totalorder %s35, 0
      %p216 = por %p214, %p215
      %s217 = ssub.s32 %s36, %s48
      %s218 = ssub.s32 %s37, %s44
      %s219 = sor.u32 %s217, %s218
      %p220 = scmp.eq.s32.totalorder %s219, 0
      %s222 = sadd.s32 %s221, 1
      %s223 = scalar_select %p220, %s221, %s222
      %p226 = pneg %p220
      %p227 = scmp.eq.s32.totalorder %s29, 1
      %p228 = por %p226, %p227
      %p229 = scmp.ne.s32.totalorder %s221, %s224
      %p230 = scmp.eq.s32.totalorder %s29, 0
      %p231 = por %p229, %p230
      %p232 = scmp.ne.s32.totalorder %s221, %s224
      %p233 = scmp.eq.s32.totalorder %s34, 1
      %p234 = por %p232, %p233
      %p235 = scmp.ne.s32.totalorder %s224, %s225
      %p236 = scmp.eq.s32.totalorder %s34, 0
      %p237 = por %p235, %p236
      %p238 = scmp.ne.s32.totalorder %s224, %s225
      %p239 = scmp.eq.s32.totalorder %s35, 1
      %p240 = por %p238, %p239
      %p242 = scmp.ne.s32.totalorder %s225, %s241
      %p243 = scmp.eq.s32.totalorder %s35, 0
      %p244 = por %p242, %p243
      %s245 = ssub.s32 %s36, %s48
      %s246 = ssub.s32 %s37, %s44
      %s247 = sor.u32 %s245, %s246
      %p248 = scmp.eq.s32.totalorder %s247, 0
      %s250 = sadd.s32 %s249, 1
      %s251 = scalar_select %p248, %s249, %s250
      %p254 = pneg %p248
      %p255 = scmp.eq.s32.totalorder %s29, 1
      %p256 = por %p254, %p255
      %p257 = scmp.ne.s32.totalorder %s249, %s252
      %p258 = scmp.eq.s32.totalorder %s29, 0
      %p259 = por %p257, %p258
      %p260 = scmp.ne.s32.totalorder %s249, %s252
      %p261 = scmp.eq.s32.totalorder %s34, 1
      %p262 = por %p260, %p261
      %p263 = scmp.ne.s32.totalorder %s252, %s253
      %p264 = scmp.eq.s32.totalorder %s34, 0
      %p265 = por %p263, %p264
      %p266 = scmp.ne.s32.totalorder %s252, %s253
      %p267 = scmp.eq.s32.totalorder %s35, 1
      %p268 = por %p266, %p267
      %p270 = scmp.ne.s32.totalorder %s253, %s269
      %p271 = scmp.eq.s32.totalorder %s35, 0
      %p272 = por %p270, %p271
      %p273 = scmp.le.s32.totalorder 1, %s29
      %p274 = scmp.lt.s32.totalorder %s29, 3
      %p275 = pnand %p273, %p274
      %p276 = pneg %p275
      // Predicated region
      $region9: #{tpu_custom_call.1} parent=5 // pred_check
        _
      $region10: #{tpu_custom_call.1} parent=5 // pred_check_branch
        %278 = sbr.rel (%p275) target = $region12
      $region11: #{tpu_custom_call.1} parent=5 // pred_region
        %s279 = ssub.s32 %s29, 1
        // Predicated region
        $region13: #{tpu_custom_call.1} parent=11 // pred_check
          %p280 = pneg %p90
        $region14: #{tpu_custom_call.1} parent=11 // pred_check_branch
          %282 = sbr.rel (%p280) target = $region16
        $region15: #{tpu_custom_call.1} parent=11 // pred_region
          %s284 = ssub.s32 16, 16
          %285 = vsyncadd [#allocation6], %s284
          %s287 = sshll.u32 [#allocation5], 4
          %s288 = int_to_ptr.vmem [resolvable:$true] %s287
          %290 = dma.hbm_to_vmem [thread:$0]  %s1, 16, %s288, [#allocation6]
        $region16: #{tpu_custom_call.1} parent=11 // pred_fallthru
          _
        // Predicated region
        $region17: #{tpu_custom_call.1} parent=11 // pred_check
          %p291 = pneg %p111
        $region18: #{tpu_custom_call.1} parent=11 // pred_check_branch
          %293 = sbr.rel (%p291) target = $region20
        $region19: #{tpu_custom_call.1} parent=11 // pred_region
          %s295 = ssub.s32 1024, 1024
          %296 = vsyncadd [#allocation6], %s295
          %s297 = sshll.u32 [#allocation7], 4
          %s298 = int_to_ptr.vmem [resolvable:$true] %s297
          %303 = dma.hbm_to_vmem [thread:$0]  %s2, 1024, %s298, [#allocation6], 64, 64, 4
        $region20: #{tpu_custom_call.1} parent=11 // pred_fallthru
          _
        // Predicated region
        $region21: #{tpu_custom_call.1} parent=11 // pred_check
          %p304 = pneg %p132
        $region22: #{tpu_custom_call.1} parent=11 // pred_check_branch
          %306 = sbr.rel (%p304) target = $region24
        $region23: #{tpu_custom_call.1} parent=11 // pred_region
          %s308 = ssub.s32 1024, 1024
          %309 = vsyncadd [#allocation9], %s308
          %s310 = sshll.u32 [#allocation8], 4
          %s311 = int_to_ptr.vmem [resolvable:$true] %s310
          %316 = dma.hbm_to_vmem [thread:$0]  %s3, 1024, %s311, [#allocation9], 64, 64, 4
        $region24: #{tpu_custom_call.1} parent=11 // pred_fallthru
          _
        // Predicated region
        $region25: #{tpu_custom_call.1} parent=11 // pred_check
          %p317 = pneg %p153
        $region26: #{tpu_custom_call.1} parent=11 // pred_check_branch
          %319 = sbr.rel (%p317) target = $region28
        $region27: #{tpu_custom_call.1} parent=11 // pred_region
          %s321 = ssub.s32 1024, 1024
          %322 = vsyncadd [#allocation9], %s321
          %s323 = sshll.u32 [#allocation10], 4
          %s324 = int_to_ptr.vmem [resolvable:$true] %s323
          %329 = dma.hbm_to_vmem [thread:$0]  %s4, 1024, %s324, [#allocation9], 64, 64, 4
        $region28: #{tpu_custom_call.1} parent=11 // pred_fallthru
          _
      $region12: #{tpu_custom_call.1} parent=5 // pred_fallthru
        _
      %p330 = scmp.lt.s32.totalorder %s29, 2
      // Predicated region
      $region29: #{tpu_custom_call.1} parent=5 // pred_check
        %p331 = pneg %p330
      $region30: #{tpu_custom_call.1} parent=5 // pred_check_branch
        %333 = sbr.rel (%p331) target = $region32
      $region31: #{tpu_custom_call.1} parent=5 // pred_region
        // Predicated region
        $region33: #{tpu_custom_call.1} parent=31 // pred_check
          %p334 = pneg %p63
        $region34: #{tpu_custom_call.1} parent=31 // pred_check_branch
          %336 = sbr.rel (%p334) target = $region36
        $region35: #{tpu_custom_call.1} parent=31 // pred_region
          %s337 = sand.u32 %s53, 1
          %s338 = scalar_lea.sflag [#allocation3], %s337
          %s339 = sand.u32 %s53, 1
          %s340 = smul.addr %s339, 8
          %s341 = scalar_lea.vmem [#allocation2], %s340
          %s343 = ssub.s32 128, 128
          %344 = vsyncadd %s338, %s343
          %s345 = sadd.s32 %s37, %s36
          %s346 = smul.addr %s345, 128
          %s347 = scalar_lea.hbm %s0, %s346
          %s349 = sshll.u32 %s341, 4
          %s350 = int_to_ptr.vmem [resolvable:$true] %s349
          %352 = dma.hbm_to_vmem [thread:$0]  %s347, 128, %s350, %s338
        $region36: #{tpu_custom_call.1} parent=31 // pred_fallthru
          _
      $region32: #{tpu_custom_call.1} parent=5 // pred_fallthru
        _
      %p353 = scmp.le.s32.totalorder 1, %s29
      %p354 = scmp.lt.s32.totalorder %s29, 3
      %p355 = pnand %p353, %p354
      %p356 = pneg %p355
      // Predicated region
      $region37: #{tpu_custom_call.1} parent=5 // pred_check
        _
      $region38: #{tpu_custom_call.1} parent=5 // pred_check_branch
        %358 = sbr.rel (%p355) target = $region40
      $region39: #{tpu_custom_call.1} parent=5 // pred_region
        %s359 = ssub.s32 %s29, 1
        %s360 = sand.u32 %s56, 1
        %s361 = scalar_lea.sflag [#allocation3], %s360
        %s362 = sand.u32 %s56, 1
        %s363 = smul.addr %s362, 8
        %s364 = scalar_lea.vmem [#allocation2], %s363
        // Predicated region
        $region41: #{tpu_custom_call.1} parent=39 // pred_check
          %p365 = pneg %p69
        $region42: #{tpu_custom_call.1} parent=39 // pred_check_branch
          %367 = sbr.rel (%p365) target = $region44
        $region43: #{tpu_custom_call.1} parent=39 // pred_region
          %368 = dma.done %s361, 128
        $region44: #{tpu_custom_call.1} parent=39 // pred_fallthru
          _
        // Predicated region
        $region45: #{tpu_custom_call.1} parent=39 // pred_check
          %p369 = pneg %p90
        $region46: #{tpu_custom_call.1} parent=39 // pred_check_branch
          %371 = sbr.rel (%p369) target = $region48
        $region47: #{tpu_custom_call.1} parent=39 // pred_region
          %372 = dma.done [#allocation6], 16
        $region48: #{tpu_custom_call.1} parent=39 // pred_fallthru
          _
        // Predicated region
        $region49: #{tpu_custom_call.1} parent=39 // pred_check
          %p373 = pneg %p111
        $region50: #{tpu_custom_call.1} parent=39 // pred_check_branch
          %375 = sbr.rel (%p373) target = $region52
        $region51: #{tpu_custom_call.1} parent=39 // pred_region
          %376 = dma.done [#allocation6], 1024
        $region52: #{tpu_custom_call.1} parent=39 // pred_fallthru
          _
        // Predicated region
        $region53: #{tpu_custom_call.1} parent=39 // pred_check
          %p377 = pneg %p132
        $region54: #{tpu_custom_call.1} parent=39 // pred_check_branch
          %379 = sbr.rel (%p377) target = $region56
        $region55: #{tpu_custom_call.1} parent=39 // pred_region
          %380 = dma.done [#allocation9], 1024
        $region56: #{tpu_custom_call.1} parent=39 // pred_fallthru
          _
        // Predicated region
        $region57: #{tpu_custom_call.1} parent=39 // pred_check
          %p381 = pneg %p153
        $region58: #{tpu_custom_call.1} parent=39 // pred_check_branch
          %383 = sbr.rel (%p381) target = $region60
        $region59: #{tpu_custom_call.1} parent=39 // pred_region
          %384 = dma.done [#allocation9], 1024
        $region60: #{tpu_custom_call.1} parent=39 // pred_fallthru
          _
        %s385 = sand.u32 %s56, 1
        %s386 = scalar_lea.sflag [#allocation3], %s385
        %s387 = sand.u32 %s56, 1
        %s388 = smul.addr %s387, 8
        %s389 = scalar_lea.vmem [#allocation2], %s388
        %p390 = pneg %p69
        %p391 = pneg %p66
        %p392 = pneg %p90
        %p393 = pneg %p87
        %p394 = pneg %p111
        %p395 = pneg %p108
        %p396 = pneg %p132
        %p397 = pneg %p129
        %p398 = pneg %p153
        %p399 = pneg %p150
        %p400 = pneg %p181
        %p401 = pneg %p178
        %s402 = sand.u32 %s168, 1
        %s403 = scalar_lea.sflag [#allocation4], %s402
        %s404 = sand.u32 %s168, 1
        %s405 = smul.addr %s404, 16
        %s406 = scalar_lea.vmem [#allocation11], %s405
        %p407 = pneg %p209
        %p408 = pneg %p206
        %s409 = sand.u32 %s34, 1
        %s410 = scalar_lea.sflag [#allocation13], %s409
        %s411 = sand.u32 %s196, 1
        %s412 = smul.addr %s411, 16
        %s413 = scalar_lea.vmem [#allocation12], %s412
        %p414 = pneg %p237
        %p415 = pneg %p234
        %s416 = sand.u32 %s34, 1
        %s417 = scalar_lea.sflag [#allocation13], %s416
        %s418 = sand.u32 %s224, 1
        %s419 = smul.addr %s418, 16
        %s420 = scalar_lea.vmem [#allocation14], %s419
        %p421 = pneg %p265
        %p422 = pneg %p262
        %s423 = sand.u32 %s252, 1
        %s424 = scalar_lea.sflag [#allocation16], %s423
        %s425 = sand.u32 %s252, 1
        %s426 = smul.addr %s425, 8
        %s427 = scalar_lea.vmem [#allocation15], %s426
        %v429 = vld [vmem:[%s364] sm:$0xff]
        %v430 = vld [vmem:[#allocation5] sm:$0x1]
        %v431 = vmul.f32 %v429, %v429
        %vm432 = vcmask 261120
        %v433 = vsel %vm432, %v431, 0.0
        %434 = vadd.xlane.f32.xlu0 %v433
        %v435 = vpop.xlane.xlu0 %434
        %v436 = vrcp.pop 32.0
        %v437 = vmul.f32 %v435, %v436
        %v438 = vadd.f32 %v437, 1e-06
        %v439 = vrsqrt.pop %v438
        %v440 = vmul.f32 %v429, %v439
        %v442 = vlaneseq
        %v443 = vshrl.u32 %v442, 7
        %v444 = vsub.s32 0, %v443
        %v445 = vrot.slane %v430, %v444
        %v447 = vmul.f32 %v440, %v445
        %448 = vst.msk [vmem:[%s427] sm:$0xff] %vm432, %v447
        %v449 = vpack.c.bf16 %v447, %v447
        %v450 = vld [vmem:[#allocation7] sm:$0xf]
        %v451 = vld [vmem:[#allocation7 + $0x4] sm:$0xf]
        %v452 = vld [vmem:[#allocation7 + $0x8] sm:$0xf]
        %v453 = vld [vmem:[#allocation7 + $0xc] sm:$0xf]
        %v458 = vunpack.c.l.b16 %v450
        %v459 = vunpack.c.l.b16 %v451
        %v460 = vunpack.c.l.b16 %v452
        %v461 = vunpack.c.l.b16 %v453
        %v462 = vpack.c.b16 %v459, %v458
        %v463 = vpack.c.b16 %v461, %v460
        %v467 = vsel %vm432, %v449, 0
        %469 = vmatprep.subr.bf16.mxu0 0
        %470 = vmatpush1.bf16.msra.mxu0 %v462
        %471 = vmatprep.subr.bf16.mxu0 0
        %472 = vmatpush1.bf16.msra.mxu0 %v463
        %473 = vmatprep.subr.bf16.mxu0 0
        %474 = vmatpush1.bf16.msra.mxu0 0
        %475 = vmatprep.subr.bf16.mxu0 0
        %476 = vmatpush1.bf16.msra.mxu0 0
        %477 = vmatprep.subr.bf16.mxu0 0
        %478 = vmatpush1.bf16.msra.mxu0 0
        %479 = vmatprep.subr.bf16.mxu0 0
        %480 = vmatpush1.bf16.msra.mxu0 0
        %481 = vmatprep.subr.bf16.mxu0 0
        %482 = vmatpush1.bf16.msra.mxu0 0
        %483 = vmatprep.subr.bf16.mxu0 0
        %484 = vmatpush1.bf16.msra.mxu0 0
        %485 = vmatprep.subr.bf16.mxu0 0
        %486 = vmatpush1.bf16.msra.mxu0 0
        %487 = vmatprep.subr.bf16.mxu0 0
        %488 = vmatpush1.bf16.msra.mxu0 0
        %489 = vmatprep.subr.bf16.mxu0 0
        %490 = vmatpush1.bf16.msra.mxu0 0
        %491 = vmatprep.subr.bf16.mxu0 0
        %492 = vmatpush1.bf16.msra.mxu0 0
        %493 = vmatprep.subr.bf16.mxu0 0
        %494 = vmatpush1.bf16.msra.mxu0 0
        %495 = vmatprep.subr.bf16.mxu0 0
        %496 = vmatpush1.bf16.msra.mxu0 0
        %497 = vmatprep.subr.bf16.mxu0 0
        %498 = vmatpush1.bf16.msra.mxu0 0
        %499 = vmatprep.subr.bf16.mxu0 0
        %500 = vmatpush1.bf16.msra.mxu0 0
        %501 = vmatprep.mubr.bf16.mxu0 0
        %502 = vmatmul.mubr.bf16.gmra.mrb[0].mxu0 %v467
        %v503 = vpop.f32.mrb[0].mxu0
        %v504 = vadd.f32 0.0, %v503
        %v505 = vpop.f32.mrb[0].mxu0
        %v506 = vpop.f32.mrb[0].mxu0
        %v507 = vpop.f32.mrb[0].mxu0
        %508 = vdwg.mxu0
        %v509 = vpack.c.bf16 %v504, %v504
        %vm510 = vcmask 60416
        %511 = vst.msk [vmem:[%s406] sm:$0xf] %vm510, %v509
        %v512 = vld [vmem:[#allocation8] sm:$0xf]
        %v513 = vld [vmem:[#allocation8 + $0x4] sm:$0xf]
        %v514 = vld [vmem:[#allocation8 + $0x8] sm:$0xf]
        %v515 = vld [vmem:[#allocation8 + $0xc] sm:$0xf]
        %v520 = vunpack.c.l.b16 %v512
        %v521 = vunpack.c.l.b16 %v513
        %v522 = vunpack.c.l.b16 %v514
        %v523 = vunpack.c.l.b16 %v515
        %v524 = vpack.c.b16 %v521, %v520
        %v525 = vpack.c.b16 %v523, %v522
        %528 = vmatprep.subr.bf16.mxu0 0
        %529 = vmatpush1.bf16.msra.mxu0 %v524
        %530 = vmatprep.subr.bf16.mxu0 0
        %531 = vmatpush1.bf16.msra.mxu0 %v525
        %532 = vmatprep.subr.bf16.mxu0 0
        %533 = vmatpush1.bf16.msra.mxu0 0
        %534 = vmatprep.subr.bf16.mxu0 0
        %535 = vmatpush1.bf16.msra.mxu0 0
        %536 = vmatprep.subr.bf16.mxu0 0
        %537 = vmatpush1.bf16.msra.mxu0 0
        %538 = vmatprep.subr.bf16.mxu0 0
        %539 = vmatpush1.bf16.msra.mxu0 0
        %540 = vmatprep.subr.bf16.mxu0 0
        %541 = vmatpush1.bf16.msra.mxu0 0
        %542 = vmatprep.subr.bf16.mxu0 0
        %543 = vmatpush1.bf16.msra.mxu0 0
        %544 = vmatprep.subr.bf16.mxu0 0
        %545 = vmatpush1.bf16.msra.mxu0 0
        %546 = vmatprep.subr.bf16.mxu0 0
        %547 = vmatpush1.bf16.msra.mxu0 0
        %548 = vmatprep.subr.bf16.mxu0 0
        %549 = vmatpush1.bf16.msra.mxu0 0
        %550 = vmatprep.subr.bf16.mxu0 0
        %551 = vmatpush1.bf16.msra.mxu0 0
        %552 = vmatprep.subr.bf16.mxu0 0
        %553 = vmatpush1.bf16.msra.mxu0 0
        %554 = vmatprep.subr.bf16.mxu0 0
        %555 = vmatpush1.bf16.msra.mxu0 0
        %556 = vmatprep.subr.bf16.mxu0 0
        %557 = vmatpush1.bf16.msra.mxu0 0
        %558 = vmatprep.subr.bf16.mxu0 0
        %559 = vmatpush1.bf16.msra.mxu0 0
        %560 = vmatprep.mubr.bf16.mxu0 0
        %561 = vmatmul.mubr.bf16.gmra.mrb[0].mxu0 %v467
        %v562 = vpop.f32.mrb[0].mxu0
        %v563 = vadd.f32 0.0, %v562
        %v564 = vpop.f32.mrb[0].mxu0
        %v565 = vpop.f32.mrb[0].mxu0
        %v566 = vpop.f32.mrb[0].mxu0
        %567 = vdwg.mxu0
        %v568 = vpack.c.bf16 %v563, %v563
        %569 = vst.msk [vmem:[%s413] sm:$0xf] %vm510, %v568
        %v570 = vld [vmem:[#allocation10] sm:$0xf]
        %v571 = vld [vmem:[#allocation10 + $0x4] sm:$0xf]
        %v572 = vld [vmem:[#allocation10 + $0x8] sm:$0xf]
        %v573 = vld [vmem:[#allocation10 + $0xc] sm:$0xf]
        %v578 = vunpack.c.l.b16 %v570
        %v579 = vunpack.c.l.b16 %v571
        %v580 = vunpack.c.l.b16 %v572
        %v581 = vunpack.c.l.b16 %v573
        %v582 = vpack.c.b16 %v579, %v578
        %v583 = vpack.c.b16 %v581, %v580
        %586 = vmatprep.subr.bf16.mxu0 0
        %587 = vmatpush1.bf16.msra.mxu0 %v582
        %588 = vmatprep.subr.bf16.mxu0 0
        %589 = vmatpush1.bf16.msra.mxu0 %v583
        %590 = vmatprep.subr.bf16.mxu0 0
        %591 = vmatpush1.bf16.msra.mxu0 0
        %592 = vmatprep.subr.bf16.mxu0 0
        %593 = vmatpush1.bf16.msra.mxu0 0
        %594 = vmatprep.subr.bf16.mxu0 0
        %595 = vmatpush1.bf16.msra.mxu0 0
        %596 = vmatprep.subr.bf16.mxu0 0
        %597 = vmatpush1.bf16.msra.mxu0 0
        %598 = vmatprep.subr.bf16.mxu0 0
        %599 = vmatpush1.bf16.msra.mxu0 0
        %600 = vmatprep.subr.bf16.mxu0 0
        %601 = vmatpush1.bf16.msra.mxu0 0
        %602 = vmatprep.subr.bf16.mxu0 0
        %603 = vmatpush1.bf16.msra.mxu0 0
        %604 = vmatprep.subr.bf16.mxu0 0
        %605 = vmatpush1.bf16.msra.mxu0 0
        %606 = vmatprep.subr.bf16.mxu0 0
        %607 = vmatpush1.bf16.msra.mxu0 0
        %608 = vmatprep.subr.bf16.mxu0 0
        %609 = vmatpush1.bf16.msra.mxu0 0
        %610 = vmatprep.subr.bf16.mxu0 0
        %611 = vmatpush1.bf16.msra.mxu0 0
        %612 = vmatprep.subr.bf16.mxu0 0
        %613 = vmatpush1.bf16.msra.mxu0 0
        %614 = vmatprep.subr.bf16.mxu0 0
        %615 = vmatpush1.bf16.msra.mxu0 0
        %616 = vmatprep.subr.bf16.mxu0 0
        %617 = vmatpush1.bf16.msra.mxu0 0
        %618 = vmatprep.mubr.bf16.mxu0 0
        %619 = vmatmul.mubr.bf16.gmra.mrb[0].mxu0 %v467
        %v620 = vpop.f32.mrb[0].mxu0
        %v621 = vadd.f32 0.0, %v620
        %v622 = vpop.f32.mrb[0].mxu0
        %v623 = vpop.f32.mrb[0].mxu0
        %v624 = vpop.f32.mrb[0].mxu0
        %625 = vdwg.mxu0
        %v626 = vpack.c.bf16 %v621, %v621
        %627 = vst.msk [vmem:[%s420] sm:$0xf] %vm510, %v626
        %s628 = scalar_lea.vmem [#allocation7], 16
        %v629 = vld [vmem:[%s628] sm:$0xf]
        %v630 = vld [vmem:[%s628 + $0x4] sm:$0xf]
        %v631 = vld [vmem:[%s628 + $0x8] sm:$0xf]
        %v632 = vld [vmem:[%s628 + $0xc] sm:$0xf]
        %v637 = vunpack.c.l.b16 %v629
        %v638 = vunpack.c.l.b16 %v630
        %v639 = vunpack.c.l.b16 %v631
        %v640 = vunpack.c.l.b16 %v632
        %v641 = vpack.c.b16 %v638, %v637
        %v642 = vpack.c.b16 %v640, %v639
        %645 = vmatprep.subr.bf16.mxu0 0
        %646 = vmatpush1.bf16.msra.mxu0 %v641
        %647 = vmatprep.subr.bf16.mxu0 0
        %648 = vmatpush1.bf16.msra.mxu0 %v642
        %649 = vmatprep.subr.bf16.mxu0 0
        %650 = vmatpush1.bf16.msra.mxu0 0
        %651 = vmatprep.subr.bf16.mxu0 0
        %652 = vmatpush1.bf16.msra.mxu0 0
        %653 = vmatprep.subr.bf16.mxu0 0
        %654 = vmatpush1.bf16.msra.mxu0 0
        %655 = vmatprep.subr.bf16.mxu0 0
        %656 = vmatpush1.bf16.msra.mxu0 0
        %657 = vmatprep.subr.bf16.mxu0 0
        %658 = vmatpush1.bf16.msra.mxu0 0
        %659 = vmatprep.subr.bf16.mxu0 0
        %660 = vmatpush1.bf16.msra.mxu0 0
        %661 = vmatprep.subr.bf16.mxu0 0
        %662 = vmatpush1.bf16.msra.mxu0 0
        %663 = vmatprep.subr.bf16.mxu0 0
        %664 = vmatpush1.bf16.msra.mxu0 0
        %665 = vmatprep.subr.bf16.mxu0 0
        %666 = vmatpush1.bf16.msra.mxu0 0
        %667 = vmatprep.subr.bf16.mxu0 0
        %668 = vmatpush1.bf16.msra.mxu0 0
        %669 = vmatprep.subr.bf16.mxu0 0
        %670 = vmatpush1.bf16.msra.mxu0 0
        %671 = vmatprep.subr.bf16.mxu0 0
        %672 = vmatpush1.bf16.msra.mxu0 0
        %673 = vmatprep.subr.bf16.mxu0 0
        %674 = vmatpush1.bf16.msra.mxu0 0
        %675 = vmatprep.subr.bf16.mxu0 0
        %676 = vmatpush1.bf16.msra.mxu0 0
        %677 = vmatprep.mubr.bf16.mxu0 0
        %678 = vmatmul.mubr.bf16.gmra.mrb[0].mxu0 %v467
        %v679 = vpop.f32.mrb[0].mxu0
        %v680 = vadd.f32 0.0, %v679
        %v681 = vpop.f32.mrb[0].mxu0
        %v682 = vpop.f32.mrb[0].mxu0
        %v683 = vpop.f32.mrb[0].mxu0
        %684 = vdwg.mxu0
        %v685 = vpack.c.bf16 %v680, %v680
        %s686 = scalar_lea.vmem %s406, 4 [#allocation11]
        %687 = vst.msk [vmem:[%s686] sm:$0xf] %vm510, %v685
        %s688 = scalar_lea.vmem [#allocation8], 16
        %v689 = vld [vmem:[%s688] sm:$0xf]
        %v690 = vld [vmem:[%s688 + $0x4] sm:$0xf]
        %v691 = vld [vmem:[%s688 + $0x8] sm:$0xf]
        %v692 = vld [vmem:[%s688 + $0xc] sm:$0xf]
        %v697 = vunpack.c.l.b16 %v689
        %v698 = vunpack.c.l.b16 %v690
        %v699 = vunpack.c.l.b16 %v691
        %v700 = vunpack.c.l.b16 %v692
        %v701 = vpack.c.b16 %v698, %v697
        %v702 = vpack.c.b16 %v700, %v699
        %705 = vmatprep.subr.bf16.mxu0 0
        %706 = vmatpush1.bf16.msra.mxu0 %v701
        %707 = vmatprep.subr.bf16.mxu0 0
        %708 = vmatpush1.bf16.msra.mxu0 %v702
        %709 = vmatprep.subr.bf16.mxu0 0
        %710 = vmatpush1.bf16.msra.mxu0 0
        %711 = vmatprep.subr.bf16.mxu0 0
        %712 = vmatpush1.bf16.msra.mxu0 0
        %713 = vmatprep.subr.bf16.mxu0 0
        %714 = vmatpush1.bf16.msra.mxu0 0
        %715 = vmatprep.subr.bf16.mxu0 0
        %716 = vmatpush1.bf16.msra.mxu0 0
        %717 = vmatprep.subr.bf16.mxu0 0
        %718 = vmatpush1.bf16.msra.mxu0 0
        %719 = vmatprep.subr.bf16.mxu0 0
        %720 = vmatpush1.bf16.msra.mxu0 0
        %721 = vmatprep.subr.bf16.mxu0 0
        %722 = vmatpush1.bf16.msra.mxu0 0
        %723 = vmatprep.subr.bf16.mxu0 0
        %724 = vmatpush1.bf16.msra.mxu0 0
        %725 = vmatprep.subr.bf16.mxu0 0
        %726 = vmatpush1.bf16.msra.mxu0 0
        %727 = vmatprep.subr.bf16.mxu0 0
        %728 = vmatpush1.bf16.msra.mxu0 0
        %729 = vmatprep.subr.bf16.mxu0 0
        %730 = vmatpush1.bf16.msra.mxu0 0
        %731 = vmatprep.subr.bf16.mxu0 0
        %732 = vmatpush1.bf16.msra.mxu0 0
        %733 = vmatprep.subr.bf16.mxu0 0
        %734 = vmatpush1.bf16.msra.mxu0 0
        %735 = vmatprep.subr.bf16.mxu0 0
        %736 = vmatpush1.bf16.msra.mxu0 0
        %737 = vmatprep.mubr.bf16.mxu0 0
        %738 = vmatmul.mubr.bf16.gmra.mrb[0].mxu0 %v467
        %v739 = vpop.f32.mrb[0].mxu0
        %v740 = vadd.f32 0.0, %v739
        %v741 = vpop.f32.mrb[0].mxu0
        %v742 = vpop.f32.mrb[0].mxu0
        %v743 = vpop.f32.mrb[0].mxu0
        %744 = vdwg.mxu0
        %v745 = vpack.c.bf16 %v740, %v740
        %s746 = scalar_lea.vmem %s413, 4 [#allocation12]
        %747 = vst.msk [vmem:[%s746] sm:$0xf] %vm510, %v745
        %s748 = scalar_lea.vmem [#allocation10], 16
        %v749 = vld [vmem:[%s748] sm:$0xf]
        %v750 = vld [vmem:[%s748 + $0x4] sm:$0xf]
        %v751 = vld [vmem:[%s748 + $0x8] sm:$0xf]
        %v752 = vld [vmem:[%s748 + $0xc] sm:$0xf]
        %v757 = vunpack.c.l.b16 %v749
        %v758 = vunpack.c.l.b16 %v750
        %v759 = vunpack.c.l.b16 %v751
        %v760 = vunpack.c.l.b16 %v752
        %v761 = vpack.c.b16 %v758, %v757
        %v762 = vpack.c.b16 %v760, %v759
        %765 = vmatprep.subr.bf16.mxu0 0
        %766 = vmatpush1.bf16.msra.mxu0 %v761
        %767 = vmatprep.subr.bf16.mxu0 0
        %768 = vmatpush1.bf16.msra.mxu0 %v762
        %769 = vmatprep.subr.bf16.mxu0 0
        %770 = vmatpush1.bf16.msra.mxu0 0
        %771 = vmatprep.subr.bf16.mxu0 0
        %772 = vmatpush1.bf16.msra.mxu0 0
        %773 = vmatprep.subr.bf16.mxu0 0
        %774 = vmatpush1.bf16.msra.mxu0 0
        %775 = vmatprep.subr.bf16.mxu0 0
        %776 = vmatpush1.bf16.msra.mxu0 0
        %777 = vmatprep.subr.bf16.mxu0 0
        %778 = vmatpush1.bf16.msra.mxu0 0
        %779 = vmatprep.subr.bf16.mxu0 0
        %780 = vmatpush1.bf16.msra.mxu0 0
        %781 = vmatprep.subr.bf16.mxu0 0
        %782 = vmatpush1.bf16.msra.mxu0 0
        %783 = vmatprep.subr.bf16.mxu0 0
        %784 = vmatpush1.bf16.msra.mxu0 0
        %785 = vmatprep.subr.bf16.mxu0 0
        %786 = vmatpush1.bf16.msra.mxu0 0
        %787 = vmatprep.subr.bf16.mxu0 0
        %788 = vmatpush1.bf16.msra.mxu0 0
        %789 = vmatprep.subr.bf16.mxu0 0
        %790 = vmatpush1.bf16.msra.mxu0 0
        %791 = vmatprep.subr.bf16.mxu0 0
        %792 = vmatpush1.bf16.msra.mxu0 0
        %793 = vmatprep.subr.bf16.mxu0 0
        %794 = vmatpush1.bf16.msra.mxu0 0
        %795 = vmatprep.subr.bf16.mxu0 0
        %796 = vmatpush1.bf16.msra.mxu0 0
        %797 = vmatprep.mubr.bf16.mxu0 0
        %798 = vmatmul.mubr.bf16.gmra.mrb[0].mxu0 %v467
        %v799 = vpop.f32.mrb[0].mxu0
        %v800 = vadd.f32 0.0, %v799
        %v801 = vpop.f32.mrb[0].mxu0
        %v802 = vpop.f32.mrb[0].mxu0
        %v803 = vpop.f32.mrb[0].mxu0
        %804 = vdwg.mxu0
        %v805 = vpack.c.bf16 %v800, %v800
        %s806 = scalar_lea.vmem %s420, 4 [#allocation14]
        %807 = vst.msk [vmem:[%s806] sm:$0xf] %vm510, %v805
        %s808 = scalar_lea.vmem [#allocation7], 32
        %v809 = vld [vmem:[%s808] sm:$0xf]
        %v810 = vld [vmem:[%s808 + $0x4] sm:$0xf]
        %v811 = vld [vmem:[%s808 + $0x8] sm:$0xf]
        %v812 = vld [vmem:[%s808 + $0xc] sm:$0xf]
        %v817 = vunpack.c.l.b16 %v809
        %v818 = vunpack.c.l.b16 %v810
        %v819 = vunpack.c.l.b16 %v811
        %v820 = vunpack.c.l.b16 %v812
        %v821 = vpack.c.b16 %v818, %v817
        %v822 = vpack.c.b16 %v820, %v819
        %825 = vmatprep.subr.bf16.mxu0 0
        %826 = vmatpush1.bf16.msra.mxu0 %v821
        %827 = vmatprep.subr.bf16.mxu0 0
        %828 = vmatpush1.bf16.msra.mxu0 %v822
        %829 = vmatprep.subr.bf16.mxu0 0
        %830 = vmatpush1.bf16.msra.mxu0 0
        %831 = vmatprep.subr.bf16.mxu0 0
        %832 = vmatpush1.bf16.msra.mxu0 0
        %833 = vmatprep.subr.bf16.mxu0 0
        %834 = vmatpush1.bf16.msra.mxu0 0
        %835 = vmatprep.subr.bf16.mxu0 0
        %836 = vmatpush1.bf16.msra.mxu0 0
        %837 = vmatprep.subr.bf16.mxu0 0
        %838 = vmatpush1.bf16.msra.mxu0 0
        %839 = vmatprep.subr.bf16.mxu0 0
        %840 = vmatpush1.bf16.msra.mxu0 0
        %841 = vmatprep.subr.bf16.mxu0 0
        %842 = vmatpush1.bf16.msra.mxu0 0
        %843 = vmatprep.subr.bf16.mxu0 0
        %844 = vmatpush1.bf16.msra.mxu0 0
        %845 = vmatprep.subr.bf16.mxu0 0
        %846 = vmatpush1.bf16.msra.mxu0 0
        %847 = vmatprep.subr.bf16.mxu0 0
        %848 = vmatpush1.bf16.msra.mxu0 0
        %849 = vmatprep.subr.bf16.mxu0 0
        %850 = vmatpush1.bf16.msra.mxu0 0
        %851 = vmatprep.subr.bf16.mxu0 0
        %852 = vmatpush1.bf16.msra.mxu0 0
        %853 = vmatprep.subr.bf16.mxu0 0
        %854 = vmatpush1.bf16.msra.mxu0 0
        %855 = vmatprep.subr.bf16.mxu0 0
        %856 = vmatpush1.bf16.msra.mxu0 0
        %857 = vmatprep.mubr.bf16.mxu0 0
        %858 = vmatmul.mubr.bf16.gmra.mrb[0].mxu0 %v467
        %v859 = vpop.f32.mrb[0].mxu0
        %v860 = vadd.f32 0.0, %v859
        %v861 = vpop.f32.mrb[0].mxu0
        %v862 = vpop.f32.mrb[0].mxu0
        %v863 = vpop.f32.mrb[0].mxu0
        %864 = vdwg.mxu0
        %v865 = vpack.c.bf16 %v860, %v860
        %s866 = scalar_lea.vmem %s406, 8 [#allocation11]
        %867 = vst.msk [vmem:[%s866] sm:$0xf] %vm510, %v865
        %s868 = scalar_lea.vmem [#allocation8], 32
        %v869 = vld [vmem:[%s868] sm:$0xf]
        %v870 = vld [vmem:[%s868 + $0x4] sm:$0xf]
        %v871 = vld [vmem:[%s868 + $0x8] sm:$0xf]
        %v872 = vld [vmem:[%s868 + $0xc] sm:$0xf]
        %v877 = vunpack.c.l.b16 %v869
        %v878 = vunpack.c.l.b16 %v870
        %v879 = vunpack.c.l.b16 %v871
        %v880 = vunpack.c.l.b16 %v872
        %v881 = vpack.c.b16 %v878, %v877
        %v882 = vpack.c.b16 %v880, %v879
        %885 = vmatprep.subr.bf16.mxu0 0
        %886 = vmatpush1.bf16.msra.mxu0 %v881
        %887 = vmatprep.subr.bf16.mxu0 0
        %888 = vmatpush1.bf16.msra.mxu0 %v882
        %889 = vmatprep.subr.bf16.mxu0 0
        %890 = vmatpush1.bf16.msra.mxu0 0
        %891 = vmatprep.subr.bf16.mxu0 0
        %892 = vmatpush1.bf16.msra.mxu0 0
        %893 = vmatprep.subr.bf16.mxu0 0
        %894 = vmatpush1.bf16.msra.mxu0 0
        %895 = vmatprep.subr.bf16.mxu0 0
        %896 = vmatpush1.bf16.msra.mxu0 0
        %897 = vmatprep.subr.bf16.mxu0 0
        %898 = vmatpush1.bf16.msra.mxu0 0
        %899 = vmatprep.subr.bf16.mxu0 0
        %900 = vmatpush1.bf16.msra.mxu0 0
        %901 = vmatprep.subr.bf16.mxu0 0
        %902 = vmatpush1.bf16.msra.mxu0 0
        %903 = vmatprep.subr.bf16.mxu0 0
        %904 = vmatpush1.bf16.msra.mxu0 0
        %905 = vmatprep.subr.bf16.mxu0 0
        %906 = vmatpush1.bf16.msra.mxu0 0
        %907 = vmatprep.subr.bf16.mxu0 0
        %908 = vmatpush1.bf16.msra.mxu0 0
        %909 = vmatprep.subr.bf16.mxu0 0
        %910 = vmatpush1.bf16.msra.mxu0 0
        %911 = vmatprep.subr.bf16.mxu0 0
        %912 = vmatpush1.bf16.msra.mxu0 0
        %913 = vmatprep.subr.bf16.mxu0 0
        %914 = vmatpush1.bf16.msra.mxu0 0
        %915 = vmatprep.subr.bf16.mxu0 0
        %916 = vmatpush1.bf16.msra.mxu0 0
        %917 = vmatprep.mubr.bf16.mxu0 0
        %918 = vmatmul.mubr.bf16.gmra.mrb[0].mxu0 %v467
        %v919 = vpop.f32.mrb[0].mxu0
        %v920 = vadd.f32 0.0, %v919
        %v921 = vpop.f32.mrb[0].mxu0
        %v922 = vpop.f32.mrb[0].mxu0
        %v923 = vpop.f32.mrb[0].mxu0
        %924 = vdwg.mxu0
        %v925 = vpack.c.bf16 %v920, %v920
        %s926 = scalar_lea.vmem %s413, 8 [#allocation12]
        %927 = vst.msk [vmem:[%s926] sm:$0xf] %vm510, %v925
        %s928 = scalar_lea.vmem [#allocation10], 32
        %v929 = vld [vmem:[%s928] sm:$0xf]
        %v930 = vld [vmem:[%s928 + $0x4] sm:$0xf]
        %v931 = vld [vmem:[%s928 + $0x8] sm:$0xf]
        %v932 = vld [vmem:[%s928 + $0xc] sm:$0xf]
        %v937 = vunpack.c.l.b16 %v929
        %v938 = vunpack.c.l.b16 %v930
        %v939 = vunpack.c.l.b16 %v931
        %v940 = vunpack.c.l.b16 %v932
        %v941 = vpack.c.b16 %v938, %v937
        %v942 = vpack.c.b16 %v940, %v939
        %945 = vmatprep.subr.bf16.mxu0 0
        %946 = vmatpush1.bf16.msra.mxu0 %v941
        %947 = vmatprep.subr.bf16.mxu0 0
        %948 = vmatpush1.bf16.msra.mxu0 %v942
        %949 = vmatprep.subr.bf16.mxu0 0
        %950 = vmatpush1.bf16.msra.mxu0 0
        %951 = vmatprep.subr.bf16.mxu0 0
        %952 = vmatpush1.bf16.msra.mxu0 0
        %953 = vmatprep.subr.bf16.mxu0 0
        %954 = vmatpush1.bf16.msra.mxu0 0
        %955 = vmatprep.subr.bf16.mxu0 0
        %956 = vmatpush1.bf16.msra.mxu0 0
        %957 = vmatprep.subr.bf16.mxu0 0
        %958 = vmatpush1.bf16.msra.mxu0 0
        %959 = vmatprep.subr.bf16.mxu0 0
        %960 = vmatpush1.bf16.msra.mxu0 0
        %961 = vmatprep.subr.bf16.mxu0 0
        %962 = vmatpush1.bf16.msra.mxu0 0
        %963 = vmatprep.subr.bf16.mxu0 0
        %964 = vmatpush1.bf16.msra.mxu0 0
        %965 = vmatprep.subr.bf16.mxu0 0
        %966 = vmatpush1.bf16.msra.mxu0 0
        %967 = vmatprep.subr.bf16.mxu0 0
        %968 = vmatpush1.bf16.msra.mxu0 0
        %969 = vmatprep.subr.bf16.mxu0 0
        %970 = vmatpush1.bf16.msra.mxu0 0
        %971 = vmatprep.subr.bf16.mxu0 0
        %972 = vmatpush1.bf16.msra.mxu0 0
        %973 = vmatprep.subr.bf16.mxu0 0
        %974 = vmatpush1.bf16.msra.mxu0 0
        %975 = vmatprep.subr.bf16.mxu0 0
        %976 = vmatpush1.bf16.msra.mxu0 0
        %977 = vmatprep.mubr.bf16.mxu0 0
        %978 = vmatmul.mubr.bf16.gmra.mrb[0].mxu0 %v467
        %v979 = vpop.f32.mrb[0].mxu0
        %v980 = vadd.f32 0.0, %v979
        %v981 = vpop.f32.mrb[0].mxu0
        %v982 = vpop.f32.mrb[0].mxu0
        %v983 = vpop.f32.mrb[0].mxu0
        %984 = vdwg.mxu0
        %v985 = vpack.c.bf16 %v980, %v980
        %s986 = scalar_lea.vmem %s420, 8 [#allocation14]
        %987 = vst.msk [vmem:[%s986] sm:$0xf] %vm510, %v985
        %s988 = scalar_lea.vmem [#allocation7], 48
        %v989 = vld [vmem:[%s988] sm:$0xf]
        %v990 = vld [vmem:[%s988 + $0x4] sm:$0xf]
        %v991 = vld [vmem:[%s988 + $0x8] sm:$0xf]
        %v992 = vld [vmem:[%s988 + $0xc] sm:$0xf]
        %v997 = vunpack.c.l.b16 %v989
        %v998 = vunpack.c.l.b16 %v990
        %v999 = vunpack.c.l.b16 %v991
        %v1000 = vunpack.c.l.b16 %v992
        %v1001 = vpack.c.b16 %v998, %v997
        %v1002 = vpack.c.b16 %v1000, %v999
        %1005 = vmatprep.subr.bf16.mxu0 0
        %1006 = vmatpush1.bf16.msra.mxu0 %v1001
        %1007 = vmatprep.subr.bf16.mxu0 0
        %1008 = vmatpush1.bf16.msra.mxu0 %v1002
        %1009 = vmatprep.subr.bf16.mxu0 0
        %1010 = vmatpush1.bf16.msra.mxu0 0
        %1011 = vmatprep.subr.bf16.mxu0 0
        %1012 = vmatpush1.bf16.msra.mxu0 0
        %1013 = vmatprep.subr.bf16.mxu0 0
        %1014 = vmatpush1.bf16.msra.mxu0 0
        %1015 = vmatprep.subr.bf16.mxu0 0
        %1016 = vmatpush1.bf16.msra.mxu0 0
        %1017 = vmatprep.subr.bf16.mxu0 0
        %1018 = vmatpush1.bf16.msra.mxu0 0
        %1019 = vmatprep.subr.bf16.mxu0 0
        %1020 = vmatpush1.bf16.msra.mxu0 0
        %1021 = vmatprep.subr.bf16.mxu0 0
        %1022 = vmatpush1.bf16.msra.mxu0 0
        %1023 = vmatprep.subr.bf16.mxu0 0
        %1024 = vmatpush1.bf16.msra.mxu0 0
        %1025 = vmatprep.subr.bf16.mxu0 0
        %1026 = vmatpush1.bf16.msra.mxu0 0
        %1027 = vmatprep.subr.bf16.mxu0 0
        %1028 = vmatpush1.bf16.msra.mxu0 0
        %1029 = vmatprep.subr.bf16.mxu0 0
        %1030 = vmatpush1.bf16.msra.mxu0 0
        %1031 = vmatprep.subr.bf16.mxu0 0
        %1032 = vmatpush1.bf16.msra.mxu0 0
        %1033 = vmatprep.subr.bf16.mxu0 0
        %1034 = vmatpush1.bf16.msra.mxu0 0
        %1035 = vmatprep.subr.bf16.mxu0 0
        %1036 = vmatpush1.bf16.msra.mxu0 0
        %1037 = vmatprep.mubr.bf16.mxu0 0
        %1038 = vmatmul.mubr.bf16.gmra.mrb[0].mxu0 %v467
        %v1039 = vpop.f32.mrb[0].mxu0
        %v1040 = vadd.f32 0.0, %v1039
        %v1041 = vpop.f32.mrb[0].mxu0
        %v1042 = vpop.f32.mrb[0].mxu0
        %v1043 = vpop.f32.mrb[0].mxu0
        %1044 = vdwg.mxu0
        %v1045 = vpack.c.bf16 %v1040, %v1040
        %s1046 = scalar_lea.vmem %s406, 12 [#allocation11]
        %1047 = vst.msk [vmem:[%s1046] sm:$0xf] %vm510, %v1045
        %s1048 = scalar_lea.vmem [#allocation8], 48
        %v1049 = vld [vmem:[%s1048] sm:$0xf]
        %v1050 = vld [vmem:[%s1048 + $0x4] sm:$0xf]
        %v1051 = vld [vmem:[%s1048 + $0x8] sm:$0xf]
        %v1052 = vld [vmem:[%s1048 + $0xc] sm:$0xf]
        %v1057 = vunpack.c.l.b16 %v1049
        %v1058 = vunpack.c.l.b16 %v1050
        %v1059 = vunpack.c.l.b16 %v1051
        %v1060 = vunpack.c.l.b16 %v1052
        %v1061 = vpack.c.b16 %v1058, %v1057
        %v1062 = vpack.c.b16 %v1060, %v1059
        %1065 = vmatprep.subr.bf16.mxu0 0
        %1066 = vmatpush1.bf16.msra.mxu0 %v1061
        %1067 = vmatprep.subr.bf16.mxu0 0
        %1068 = vmatpush1.bf16.msra.mxu0 %v1062
        %1069 = vmatprep.subr.bf16.mxu0 0
        %1070 = vmatpush1.bf16.msra.mxu0 0
        %1071 = vmatprep.subr.bf16.mxu0 0
        %1072 = vmatpush1.bf16.msra.mxu0 0
        %1073 = vmatprep.subr.bf16.mxu0 0
        %1074 = vmatpush1.bf16.msra.mxu0 0
        %1075 = vmatprep.subr.bf16.mxu0 0
        %1076 = vmatpush1.bf16.msra.mxu0 0
        %1077 = vmatprep.subr.bf16.mxu0 0
        %1078 = vmatpush1.bf16.msra.mxu0 0
        %1079 = vmatprep.subr.bf16.mxu0 0
        %1080 = vmatpush1.bf16.msra.mxu0 0
        %1081 = vmatprep.subr.bf16.mxu0 0
        %1082 = vmatpush1.bf16.msra.mxu0 0
        %1083 = vmatprep.subr.bf16.mxu0 0
        %1084 = vmatpush1.bf16.msra.mxu0 0
        %1085 = vmatprep.subr.bf16.mxu0 0
        %1086 = vmatpush1.bf16.msra.mxu0 0
        %1087 = vmatprep.subr.bf16.mxu0 0
        %1088 = vmatpush1.bf16.msra.mxu0 0
        %1089 = vmatprep.subr.bf16.mxu0 0
        %1090 = vmatpush1.bf16.msra.mxu0 0
        %1091 = vmatprep.subr.bf16.mxu0 0
        %1092 = vmatpush1.bf16.msra.mxu0 0
        %1093 = vmatprep.subr.bf16.mxu0 0
        %1094 = vmatpush1.bf16.msra.mxu0 0
        %1095 = vmatprep.subr.bf16.mxu0 0
        %1096 = vmatpush1.bf16.msra.mxu0 0
        %1097 = vmatprep.mubr.bf16.mxu0 0
        %1098 = vmatmul.mubr.bf16.gmra.mrb[0].mxu0 %v467
        %v1099 = vpop.f32.mrb[0].mxu0
        %v1100 = vadd.f32 0.0, %v1099
        %v1101 = vpop.f32.mrb[0].mxu0
        %v1102 = vpop.f32.mrb[0].mxu0
        %v1103 = vpop.f32.mrb[0].mxu0
        %1104 = vdwg.mxu0
        %v1105 = vpack.c.bf16 %v1100, %v1100
        %s1106 = scalar_lea.vmem %s413, 12 [#allocation12]
        %1107 = vst.msk [vmem:[%s1106] sm:$0xf] %vm510, %v1105
        %s1108 = scalar_lea.vmem [#allocation10], 48
        %v1109 = vld [vmem:[%s1108] sm:$0xf]
        %v1110 = vld [vmem:[%s1108 + $0x4] sm:$0xf]
        %v1111 = vld [vmem:[%s1108 + $0x8] sm:$0xf]
        %v1112 = vld [vmem:[%s1108 + $0xc] sm:$0xf]
        %v1117 = vunpack.c.l.b16 %v1109
        %v1118 = vunpack.c.l.b16 %v1110
        %v1119 = vunpack.c.l.b16 %v1111
        %v1120 = vunpack.c.l.b16 %v1112
        %v1121 = vpack.c.b16 %v1118, %v1117
        %v1122 = vpack.c.b16 %v1120, %v1119
        %1125 = vmatprep.subr.bf16.mxu0 0
        %1126 = vmatpush1.bf16.msra.mxu0 %v1121
        %1127 = vmatprep.subr.bf16.mxu0 0
        %1128 = vmatpush1.bf16.msra.mxu0 %v1122
        %1129 = vmatprep.subr.bf16.mxu0 0
        %1130 = vmatpush1.bf16.msra.mxu0 0
        %1131 = vmatprep.subr.bf16.mxu0 0
        %1132 = vmatpush1.bf16.msra.mxu0 0
        %1133 = vmatprep.subr.bf16.mxu0 0
        %1134 = vmatpush1.bf16.msra.mxu0 0
        %1135 = vmatprep.subr.bf16.mxu0 0
        %1136 = vmatpush1.bf16.msra.mxu0 0
        %1137 = vmatprep.subr.bf16.mxu0 0
        %1138 = vmatpush1.bf16.msra.mxu0 0
        %1139 = vmatprep.subr.bf16.mxu0 0
        %1140 = vmatpush1.bf16.msra.mxu0 0
        %1141 = vmatprep.subr.bf16.mxu0 0
        %1142 = vmatpush1.bf16.msra.mxu0 0
        %1143 = vmatprep.subr.bf16.mxu0 0
        %1144 = vmatpush1.bf16.msra.mxu0 0
        %1145 = vmatprep.subr.bf16.mxu0 0
        %1146 = vmatpush1.bf16.msra.mxu0 0
        %1147 = vmatprep.subr.bf16.mxu0 0
        %1148 = vmatpush1.bf16.msra.mxu0 0
        %1149 = vmatprep.subr.bf16.mxu0 0
        %1150 = vmatpush1.bf16.msra.mxu0 0
        %1151 = vmatprep.subr.bf16.mxu0 0
        %1152 = vmatpush1.bf16.msra.mxu0 0
        %1153 = vmatprep.subr.bf16.mxu0 0
        %1154 = vmatpush1.bf16.msra.mxu0 0
        %1155 = vmatprep.subr.bf16.mxu0 0
        %1156 = vmatpush1.bf16.msra.mxu0 0
        %1157 = vmatprep.mubr.bf16.mxu0 0
        %1158 = vmatmul.mubr.bf16.gmra.mrb[0].mxu0 %v467
        %v1159 = vpop.f32.mrb[0].mxu0
        %v1160 = vadd.f32 0.0, %v1159
        %v1161 = vpop.f32.mrb[0].mxu0
        %v1162 = vpop.f32.mrb[0].mxu0
        %v1163 = vpop.f32.mrb[0].mxu0
        %1164 = vdwg.mxu0
        %v1165 = vpack.c.bf16 %v1160, %v1160
        %s1166 = scalar_lea.vmem %s420, 12 [#allocation14]
        %1167 = vst.msk [vmem:[%s1166] sm:$0xf] %vm510, %v1165
        %s1168 = sand.u32 %s168, 1
        %s1169 = scalar_lea.sflag [#allocation4], %s1168
        %s1170 = sand.u32 %s168, 1
        %s1171 = smul.addr %s1170, 16
        %s1172 = scalar_lea.vmem [#allocation11], %s1171
        %s1173 = sand.u32 %s34, 1
        %s1174 = scalar_lea.sflag [#allocation13], %s1173
        %s1175 = sand.u32 %s196, 1
        %s1176 = smul.addr %s1175, 16
        %s1177 = scalar_lea.vmem [#allocation12], %s1176
        %s1178 = sand.u32 %s34, 1
        %s1179 = scalar_lea.sflag [#allocation13], %s1178
        %s1180 = sand.u32 %s224, 1
        %s1181 = smul.addr %s1180, 16
        %s1182 = scalar_lea.vmem [#allocation14], %s1181
        %s1183 = sand.u32 %s252, 1
        %s1184 = scalar_lea.sflag [#allocation16], %s1183
        %s1185 = sand.u32 %s252, 1
        %s1186 = smul.addr %s1185, 8
        %s1187 = scalar_lea.vmem [#allocation15], %s1186
        // Predicated region
        $region61: #{tpu_custom_call.1} parent=39 // pred_check
          %p1188 = pneg %p178
        $region62: #{tpu_custom_call.1} parent=39 // pred_check_branch
          %1190 = sbr.rel (%p1188) target = $region64
        $region63: #{tpu_custom_call.1} parent=39 // pred_region
          %s1192 = ssub.s32 256, 256
          %1193 = vsyncadd %s1169, %s1192
          %s1194 = smul.addr %s38, 4
          %s1195 = sadd.s32 %s39, %s1194
          %s1196 = smul.addr %s1195, 64
          %s1197 = scalar_lea.hbm %s5, %s1196
          %s1198 = sshll.u32 %s1172, 4
          %s1199 = int_to_ptr.vmem [resolvable:$true] %s1198
          %1204 = dma.vmem_to_hbm [thread:$0]  %s1199, 256, %s1197, %s1169, 64, 64, 4
        $region64: #{tpu_custom_call.1} parent=39 // pred_fallthru
          _
        // Predicated region
        $region65: #{tpu_custom_call.1} parent=39 // pred_check
          %p1205 = pneg %p206
        $region66: #{tpu_custom_call.1} parent=39 // pred_check_branch
          %1207 = sbr.rel (%p1205) target = $region68
        $region67: #{tpu_custom_call.1} parent=39 // pred_region
          %s1209 = ssub.s32 256, 256
          %1210 = vsyncadd %s1174, %s1209
          %s1211 = smul.addr %s38, 4
          %s1212 = sadd.s32 %s39, %s1211
          %s1213 = smul.addr %s1212, 64
          %s1214 = scalar_lea.hbm %s6, %s1213
          %s1215 = sshll.u32 %s1177, 4
          %s1216 = int_to_ptr.vmem [resolvable:$true] %s1215
          %1221 = dma.vmem_to_hbm [thread:$0]  %s1216, 256, %s1214, %s1174, 64, 64, 4
        $region68: #{tpu_custom_call.1} parent=39 // pred_fallthru
          _
        // Predicated region
        $region69: #{tpu_custom_call.1} parent=39 // pred_check
          %p1222 = pneg %p234
        $region70: #{tpu_custom_call.1} parent=39 // pred_check_branch
          %1224 = sbr.rel (%p1222) target = $region72
        $region71: #{tpu_custom_call.1} parent=39 // pred_region
          %s1226 = ssub.s32 256, 256
          %1227 = vsyncadd %s1179, %s1226
          %s1228 = smul.addr %s38, 4
          %s1229 = sadd.s32 %s39, %s1228
          %s1230 = smul.addr %s1229, 64
          %s1231 = scalar_lea.hbm %s7, %s1230
          %s1232 = sshll.u32 %s1182, 4
          %s1233 = int_to_ptr.vmem [resolvable:$true] %s1232
          %1238 = dma.vmem_to_hbm [thread:$0]  %s1233, 256, %s1231, %s1179, 64, 64, 4
        $region72: #{tpu_custom_call.1} parent=39 // pred_fallthru
          _
        // Predicated region
        $region73: #{tpu_custom_call.1} parent=39 // pred_check
          %p1239 = pneg %p262
        $region74: #{tpu_custom_call.1} parent=39 // pred_check_branch
          %1241 = sbr.rel (%p1239) target = $region76
        $region75: #{tpu_custom_call.1} parent=39 // pred_region
          %s1243 = ssub.s32 128, 128
          %1244 = vsyncadd %s1184, %s1243
          %s1245 = sadd.s32 %s39, %s38
          %s1246 = smul.addr %s1245, 128
          %s1247 = scalar_lea.hbm %s8, %s1246
          %s1249 = sshll.u32 %s1187, 4
          %s1250 = int_to_ptr.vmem [resolvable:$true] %s1249
          %1252 = dma.vmem_to_hbm [thread:$0]  %s1250, 128, %s1247, %s1184
        $region76: #{tpu_custom_call.1} parent=39 // pred_fallthru
          _
      $region40: #{tpu_custom_call.1} parent=5 // pred_fallthru
        _
      %p1253 = scmp.le.s32.totalorder 2, %s29
      // Predicated region
      $region77: #{tpu_custom_call.1} parent=5 // pred_check
        %p1254 = pneg %p1253
      $region78: #{tpu_custom_call.1} parent=5 // pred_check_branch
        %1256 = sbr.rel (%p1254) target = $region80
      $region79: #{tpu_custom_call.1} parent=5 // pred_region
        %s1257 = ssub.s32 %s29, 2
        // Predicated region
        $region81: #{tpu_custom_call.1} parent=79 // pred_check
          %p1258 = pneg %p184
        $region82: #{tpu_custom_call.1} parent=79 // pred_check_branch
          %1260 = sbr.rel (%p1258) target = $region84
        $region83: #{tpu_custom_call.1} parent=79 // pred_region
          %s1261 = sand.u32 %s169, 1
          %s1262 = scalar_lea.sflag [#allocation4], %s1261
          %s1263 = sand.u32 %s169, 1
          %s1264 = smul.addr %s1263, 16
          %s1265 = scalar_lea.vmem [#allocation11], %s1264
          %1266 = dma.done %s1262, 256
        $region84: #{tpu_custom_call.1} parent=79 // pred_fallthru
          _
        // Predicated region
        $region85: #{tpu_custom_call.1} parent=79 // pred_check
          %p1267 = pneg %p212
        $region86: #{tpu_custom_call.1} parent=79 // pred_check_branch
          %1269 = sbr.rel (%p1267) target = $region88
        $region87: #{tpu_custom_call.1} parent=79 // pred_region
          %s1270 = sand.u32 %s35, 1
          %s1271 = scalar_lea.sflag [#allocation13], %s1270
          %s1272 = sand.u32 %s197, 1
          %s1273 = smul.addr %s1272, 16
          %s1274 = scalar_lea.vmem [#allocation12], %s1273
          %1275 = dma.done %s1271, 256
        $region88: #{tpu_custom_call.1} parent=79 // pred_fallthru
          _
        // Predicated region
        $region89: #{tpu_custom_call.1} parent=79 // pred_check
          %p1276 = pneg %p240
        $region90: #{tpu_custom_call.1} parent=79 // pred_check_branch
          %1278 = sbr.rel (%p1276) target = $region92
        $region91: #{tpu_custom_call.1} parent=79 // pred_region
          %s1279 = sand.u32 %s35, 1
          %s1280 = scalar_lea.sflag [#allocation13], %s1279
          %s1281 = sand.u32 %s225, 1
          %s1282 = smul.addr %s1281, 16
          %s1283 = scalar_lea.vmem [#allocation14], %s1282
          %1284 = dma.done %s1280, 256
        $region92: #{tpu_custom_call.1} parent=79 // pred_fallthru
          _
        // Predicated region
        $region93: #{tpu_custom_call.1} parent=79 // pred_check
          %p1285 = pneg %p268
        $region94: #{tpu_custom_call.1} parent=79 // pred_check_branch
          %1287 = sbr.rel (%p1285) target = $region96
        $region95: #{tpu_custom_call.1} parent=79 // pred_region
          %s1288 = sand.u32 %s253, 1
          %s1289 = scalar_lea.sflag [#allocation16], %s1288
          %s1290 = sand.u32 %s253, 1
          %s1291 = smul.addr %s1290, 8
          %s1292 = scalar_lea.vmem [#allocation15], %s1291
          %1293 = dma.done %s1289, 128
        $region96: #{tpu_custom_call.1} parent=79 // pred_fallthru
          _
      $region80: #{tpu_custom_call.1} parent=5 // pred_fallthru
        _
    $region6: #{tpu_custom_call.1} parent=1 // loop_footer
      %s33 = sadd.s32 1, %s29
    $region7: #{tpu_custom_call.1} parent=1 // loop_footer_branch
      %28 = sbr.rel target = $region3
    $region8: #{tpu_custom_call.1} parent=1 // loop_exit
      _
    %1294 = vsyncpa [#allocation3], 1
    %s1295 = scalar_lea.sflag [#allocation3], 1
    %1296 = vsyncpa %s1295, 1
    %1297 = vsyncpa [#allocation6], 1
    %1298 = vsyncpa [#allocation9], 1
    %1299 = vsyncpa [#allocation4], 1
    %s1300 = scalar_lea.sflag [#allocation4], 1
    %1301 = vsyncpa %s1300, 1
    %1302 = vsyncpa [#allocation13], 1
    %s1303 = scalar_lea.sflag [#allocation13], 1
    %1304 = vsyncpa %s1303, 1
    %1305 = vsyncpa [#allocation16], 1
    %s1306 = scalar_lea.sflag [#allocation16], 1
    %1307 = vsyncpa %s1306, 1

</llo_original>
